<compile_context>
chip_gen: v7x
topology: tpu7x:2x2x1
jax: 0.10.0
libtpu: 0.0.40
codegen_flags: <defaults>
</compile_context>

<pallas_src>
import functools
import numpy as np

import jax
import jax.numpy as jnp
from jax import lax
from jax.experimental import pallas as pl
from jax.experimental.pallas import tpu as pltpu


# ----------------------------- in-kernel helpers -----------------------------

def _erf(x):
    # Abramowitz & Stegun 7.1.26 polynomial; max abs error ~1.5e-7 (f32-exact here).
    a1 = jnp.float32(0.254829592)
    a2 = jnp.float32(-0.284496736)
    a3 = jnp.float32(1.421413741)
    a4 = jnp.float32(-1.453152027)
    a5 = jnp.float32(1.061405429)
    p = jnp.float32(0.3275911)
    sign = jnp.where(x >= 0, jnp.float32(1.0), jnp.float32(-1.0))
    ax = jnp.abs(x)
    t = 1.0 / (1.0 + p * ax)
    poly = ((((a5 * t + a4) * t + a3) * t + a2) * t + a1) * t
    y = 1.0 - poly * jnp.exp(-ax * ax)
    return sign * y


def _gelu_exact(x):
    # matches torch.nn.GELU(approximate='none') / F.gelu default (erf form), f32
    return 0.5 * x * (1.0 + _erf(x * jnp.float32(0.7071067811865476)))


def _layernorm(x, w, b, eps=1e-5):
    mu = jnp.mean(x, axis=-1, keepdims=True)
    var = jnp.mean((x - mu) ** 2, axis=-1, keepdims=True)
    return (x - mu) * lax.rsqrt(var + jnp.float32(eps)) * w + b


# ------------------------------- fused kernel --------------------------------

def timeformer_kernel(x_ref, pe_ref, inpw_ref, inpb_ref,
                      wqkv_ref, bqkv_ref, wo_ref, bo_ref,
                      ln1w_ref, ln1b_ref, w1_ref, b1_ref, w2_ref, b2_ref,
                      ln2w_ref, ln2b_ref, outw_ref, outb_ref,
                      o_ref, *, num_heads):
    """Full TimeFormer forward for one sequence (grid iterates over batch)."""
    S = x_ref.shape[1]
    E = inpw_ref.shape[1]
    depth = wqkv_ref.shape[0]
    H = num_heads
    Dh = E // H
    scale = jnp.float32(1.0 / np.sqrt(Dh))

    # ---- input projection + GELU + positional encoding ----
    x = x_ref[0].astype(jnp.bfloat16)                                  # (S, In)
    h = jnp.dot(x, inpw_ref[...], preferred_element_type=jnp.float32) + inpb_ref[...]
    h = _gelu_exact(h) + pe_ref[...]                                   # (S, E) f32

    # causal (lower-triangular) mask, shared by all layers / heads
    row = lax.broadcasted_iota(jnp.int32, (S, S), 0)
    col = lax.broadcasted_iota(jnp.int32, (S, S), 1)
    causal = col <= row                                                # (S, S) bool
    neg_inf = jnp.float32(-jnp.inf)

    # q . k^T : contract last axis of both operands (no explicit transpose)
    nt_dims = (((1,), (1,)), ((), ()))

    def layer_body(d, h):
        hb = h.astype(jnp.bfloat16)

        # fused QKV projection: one (S, E) x (E, 3E) MXU issue
        qkv = jnp.dot(hb, wqkv_ref[d], preferred_element_type=jnp.float32) + bqkv_ref[d]
        qkv = qkv.astype(jnp.bfloat16)                                 # (S, 3E)
        wo_d = wo_ref[d]                                               # (H, Dh, E) bf16

        proj = None
        for hd in range(H):                                            # static unroll
            q_h = qkv[:, hd * Dh:(hd + 1) * Dh]                        # (S, Dh)
            k_h = qkv[:, E + hd * Dh:E + (hd + 1) * Dh]                # (S, Dh)
            v_h = qkv[:, 2 * E + hd * Dh:2 * E + (hd + 1) * Dh]        # (S, Dh)

            s = lax.dot_general(q_h, k_h, nt_dims,
                                preferred_element_type=jnp.float32) * scale  # (S, S)
            s = jnp.where(causal, s, neg_inf)
            s = s - jnp.max(s, axis=-1, keepdims=True)
            p = jnp.exp(s)
            p = p * pl.reciprocal(jnp.sum(p, axis=-1, keepdims=True), approx=True)

            ctx = jnp.dot(p.astype(jnp.bfloat16), v_h,
                          preferred_element_type=jnp.float32)          # (S, Dh)
            # output projection: accumulate per-head (Dh, E) slabs (no lane concat)
            head_out = jnp.dot(ctx.astype(jnp.bfloat16), wo_d[hd],
                               preferred_element_type=jnp.float32)     # (S, E)
            proj = head_out if proj is None else proj + head_out

        proj = proj + bo_ref[d]
        x1 = _layernorm(h + proj, ln1w_ref[d], ln1b_ref[d])            # norm1(residual)

        # ---- feed-forward (GELU) ----
        ff = jnp.dot(x1.astype(jnp.bfloat16), w1_ref[d],
                     preferred_element_type=jnp.float32) + b1_ref[d]
        ff = _gelu_exact(ff)
        ff = jnp.dot(ff.astype(jnp.bfloat16), w2_ref[d],
                     preferred_element_type=jnp.float32) + b2_ref[d]
        x2 = _layernorm(x1 + ff, ln2w_ref[d], ln2b_ref[d])             # norm2(residual)
        return x2

    h = lax.fori_loop(0, depth, layer_body, h)

    # lane-dense output projection (out features zero-padded to 128 lanes)
    y = jnp.dot(h.astype(jnp.bfloat16), outw_ref[...],
                preferred_element_type=jnp.float32) + outb_ref[...]
    o_ref[0] = y.astype(o_ref.dtype)


# ------------------------------- glue / wrapper -------------------------------

def sinusoidal_pe(seq_len, size):
    """PositionalEncoding1D (interleaved sin/cos), shape (seq_len, size)."""
    inv_freq = 1.0 / (10000.0 ** (np.arange(0, size, 2, dtype=np.float32) / size))
    pos = np.arange(seq_len, dtype=np.float32)
    sin_inp = np.einsum('i,j->ij', pos, inv_freq)                      # (S, size/2)
    emb = np.stack([np.sin(sin_inp), np.cos(sin_inp)], axis=-1)        # (S, size/2, 2)
    return jnp.asarray(emb.reshape(seq_len, size), jnp.float32)


def _stack(layers, name, dtype=None):
    a = jnp.stack([lp[name] for lp in layers], axis=0)
    return a.astype(dtype) if dtype is not None else a


def timeformer_forward(params, x, num_heads):
    B, S, In = x.shape
    E = params['inp_w'].shape[1]
    O = params['out_w'].shape[1]
    H = num_heads
    Dh = E // H

    # positional encoding passed once as (S, E); broadcast happens in-kernel
    pe = sinusoidal_pe(S, E)

    # matmul weights in bf16 (halves DMA/VMEM bytes); biases / LN params stay f32
    inpw = params['inp_w'].astype(jnp.bfloat16)
    inpb = params['inp_b']

    wqkv = _stack(params['layers'], 'wqkv', jnp.bfloat16)              # (D, E, 3E)
    bqkv = _stack(params['layers'], 'bqkv')                            # (D, 1, 3E)
    # pre-split the attention output projection per head: (D, H, Dh, E)
    wo = jnp.stack([lp['wo'].reshape(H, Dh, E) for lp in params['layers']],
                   axis=0).astype(jnp.bfloat16)
    bo = _stack(params['layers'], 'bo')
    ln1w = _stack(params['layers'], 'ln1w')
    ln1b = _stack(params['layers'], 'ln1b')
    w1 = _stack(params['layers'], 'w1', jnp.bfloat16)                  # (D, E, FF)
    b1 = _stack(params['layers'], 'b1')
    w2 = _stack(params['layers'], 'w2', jnp.bfloat16)                  # (D, FF, E)
    b2 = _stack(params['layers'], 'b2')
    ln2w = _stack(params['layers'], 'ln2w')
    ln2b = _stack(params['layers'], 'ln2b')

    # lane-dense output: zero-pad out features to a multiple of 128 lanes
    O_pad = ((O + 127) // 128) * 128
    outw = jnp.zeros((E, O_pad), jnp.float32).at[:, :O].set(params['out_w'])
    outw = outw.astype(jnp.bfloat16)
    outb = jnp.zeros((1, O_pad), jnp.float32).at[:, :O].set(params['out_b'])

    weights = [pe, inpw, inpb, wqkv, bqkv, wo, bo, ln1w, ln1b,
               w1, b1, w2, b2, ln2w, ln2b, outw, outb]

    def _const_spec(a):
        nd = a.ndim
        # full-array block, same block every grid step -> DMA'd once, stays resident
        return pl.BlockSpec(a.shape, lambda b, _nd=nd: (0,) * _nd)

    in_specs = [pl.BlockSpec((1, S, In), lambda b: (b, 0, 0))]
    in_specs += [_const_spec(a) for a in weights]
    out_spec = pl.BlockSpec((1, S, O_pad), lambda b: (b, 0, 0))

    y_pad = pl.pallas_call(
        functools.partial(timeformer_kernel, num_heads=num_heads),
        out_shape=jax.ShapeDtypeStruct((B, S, O_pad), jnp.float32),
        grid_spec=pltpu.PrefetchScalarGridSpec(
            num_scalar_prefetch=0, grid=(B,),
            in_specs=in_specs, out_specs=out_spec),
        compiler_params=pltpu.CompilerParams(
            dimension_semantics=("parallel",)),   # batch axis -> both v7x TCs busy
    )(x.astype(jnp.float32), *weights)

    return y_pad[:, :, :O]


# ------------------------------ parameter init --------------------------------

def init_params(key, input_size, emb_size, dim_feedforward, depth, out_size):
    def lin(k, fan_in, fan_out):
        kw, kb = jax.random.split(k)
        bound = 1.0 / np.sqrt(fan_in)
        w = jax.random.uniform(kw, (fan_in, fan_out), jnp.float32, -bound, bound)
        b = jax.random.uniform(kb, (1, fan_out), jnp.float32, -bound, bound)
        return w, b

    keys = jax.random.split(key, 2 + depth)
    params = {}
    params['inp_w'], params['inp_b'] = lin(keys[0], input_size, emb_size)
    params['out_w'], params['out_b'] = lin(keys[1], emb_size, out_size)

    layers = []
    for d in range(depth):
        lk = jax.random.split(keys[2 + d], 4)
        wqkv, bqkv = lin(lk[0], emb_size, 3 * emb_size)
        wo, bo = lin(lk[1], emb_size, emb_size)
        w1, b1 = lin(lk[2], emb_size, dim_feedforward)
        w2, b2 = lin(lk[3], dim_feedforward, emb_size)
        layers.append(dict(
            wqkv=wqkv, bqkv=bqkv, wo=wo, bo=bo,
            ln1w=jnp.ones((1, emb_size), jnp.float32),
            ln1b=jnp.zeros((1, emb_size), jnp.float32),
            w1=w1, b1=b1, w2=w2, b2=b2,
            ln2w=jnp.ones((1, emb_size), jnp.float32),
            ln2b=jnp.zeros((1, emb_size), jnp.float32)))
    params['layers'] = layers
    return params


# ----------------------------------- main --------------------------------------

if __name__ == "__main__":
    # Small, forward-consistent shapes.
    B, S = 2, 8
    input_size, emb_size = 4, 32
    n_att_heads, dim_feedforward = 4, 64
    depth, out_size = 2, 8
    # dropout = 0.0 (eval-mode forward; dropout layers are identity)
    # TODO(synk): pad_mask is accepted by the PyTorch forward but never used there,
    # so it is not plumbed into the kernel.

    key = jax.random.PRNGKey(0)
    pkey, xkey = jax.random.split(key)
    params = init_params(pkey, input_size, emb_size, dim_feedforward, depth, out_size)
    x = jax.random.normal(xkey, (B, S, input_size), jnp.float32)

    y = timeformer_forward(params, x, n_att_heads)
    y = jax.block_until_ready(y)

    assert y.shape == (B, S, out_size)
    assert bool(jnp.all(jnp.isfinite(y)))
    print("KERNEL_OK")
</pallas_src>

<mosaic_0001>
module attributes {stable_mosaic.version = 11 : i64} {
  func.func @timeformer_kernel(%arg0: i32, %arg1: memref<1x8x4xf32, #tpu.memory_space<vmem>>, %arg2: memref<8x32xf32, #tpu.memory_space<vmem>>, %arg3: memref<4x32xbf16, #tpu.memory_space<vmem>>, %arg4: memref<1x32xf32, #tpu.memory_space<vmem>>, %arg5: memref<2x32x96xbf16, #tpu.memory_space<vmem>>, %arg6: memref<2x1x96xf32, #tpu.memory_space<vmem>>, %arg7: memref<2x4x8x32xbf16, #tpu.memory_space<vmem>>, %arg8: memref<2x1x32xf32, #tpu.memory_space<vmem>>, %arg9: memref<2x1x32xf32, #tpu.memory_space<vmem>>, %arg10: memref<2x1x32xf32, #tpu.memory_space<vmem>>, %arg11: memref<2x32x64xbf16, #tpu.memory_space<vmem>>, %arg12: memref<2x1x64xf32, #tpu.memory_space<vmem>>, %arg13: memref<2x64x32xbf16, #tpu.memory_space<vmem>>, %arg14: memref<2x1x32xf32, #tpu.memory_space<vmem>>, %arg15: memref<2x1x32xf32, #tpu.memory_space<vmem>>, %arg16: memref<2x1x32xf32, #tpu.memory_space<vmem>>, %arg17: memref<32x128xbf16, #tpu.memory_space<vmem>>, %arg18: memref<1x128xf32, #tpu.memory_space<vmem>>, %arg19: memref<1x8x128xf32, #tpu.memory_space<vmem>>) attributes {dimension_semantics = [#tpu.dimension_semantics<parallel>], iteration_bounds = array<i64: 2>, scalar_prefetch = 0 : i64, scratch_operands = 0 : i64, tpu.core_type = #tpu.core_type<tc>, window_params = [{transform_indices = @transform_0, window_bounds = array<i64: 1, 8, 4>}, {pipeline_mode = #tpu.pipeline_mode<synchronous>, transform_indices = @transform_1, window_bounds = array<i64: 8, 32>}, {pipeline_mode = #tpu.pipeline_mode<synchronous>, transform_indices = @transform_2, window_bounds = array<i64: 4, 32>}, {pipeline_mode = #tpu.pipeline_mode<synchronous>, transform_indices = @transform_3, window_bounds = array<i64: 1, 32>}, {pipeline_mode = #tpu.pipeline_mode<synchronous>, transform_indices = @transform_4, window_bounds = array<i64: 2, 32, 96>}, {pipeline_mode = #tpu.pipeline_mode<synchronous>, transform_indices = @transform_5, window_bounds = array<i64: 2, 1, 96>}, {pipeline_mode = #tpu.pipeline_mode<synchronous>, transform_indices = @transform_6, window_bounds = array<i64: 2, 4, 8, 32>}, {pipeline_mode = #tpu.pipeline_mode<synchronous>, transform_indices = @transform_7, window_bounds = array<i64: 2, 1, 32>}, {pipeline_mode = #tpu.pipeline_mode<synchronous>, transform_indices = @transform_8, window_bounds = array<i64: 2, 1, 32>}, {pipeline_mode = #tpu.pipeline_mode<synchronous>, transform_indices = @transform_9, window_bounds = array<i64: 2, 1, 32>}, {pipeline_mode = #tpu.pipeline_mode<synchronous>, transform_indices = @transform_10, window_bounds = array<i64: 2, 32, 64>}, {pipeline_mode = #tpu.pipeline_mode<synchronous>, transform_indices = @transform_11, window_bounds = array<i64: 2, 1, 64>}, {pipeline_mode = #tpu.pipeline_mode<synchronous>, transform_indices = @transform_12, window_bounds = array<i64: 2, 64, 32>}, {pipeline_mode = #tpu.pipeline_mode<synchronous>, transform_indices = @transform_13, window_bounds = array<i64: 2, 1, 32>}, {pipeline_mode = #tpu.pipeline_mode<synchronous>, transform_indices = @transform_14, window_bounds = array<i64: 2, 1, 32>}, {pipeline_mode = #tpu.pipeline_mode<synchronous>, transform_indices = @transform_15, window_bounds = array<i64: 2, 1, 32>}, {pipeline_mode = #tpu.pipeline_mode<synchronous>, transform_indices = @transform_16, window_bounds = array<i64: 32, 128>}, {pipeline_mode = #tpu.pipeline_mode<synchronous>, transform_indices = @transform_17, window_bounds = array<i64: 1, 128>}, {transform_indices = @transform_18, window_bounds = array<i64: 1, 8, 128>}]} {
    %c0 = arith.constant 0 : index
    %c0_0 = arith.constant 0 : index
    %c0_1 = arith.constant 0 : index
    %0 = vector.load %arg1[%c0, %c0_0, %c0_1] : memref<1x8x4xf32, #tpu.memory_space<vmem>>, vector<1x8x4xf32>
    %1 = vector.shape_cast %0 : vector<1x8x4xf32> to vector<8x4xf32>
    %2 = arith.truncf %1 : vector<8x4xf32> to vector<8x4xbf16>
    %c0_2 = arith.constant 0 : index
    %c0_3 = arith.constant 0 : index
    %3 = vector.load %arg3[%c0_2, %c0_3] : memref<4x32xbf16, #tpu.memory_space<vmem>>, vector<4x32xbf16>
    %cst = arith.constant dense<0.000000e+00> : vector<8x32xf32>
    %4 = tpu.matmul %2, %3, %cst {dimension_numbers = #tpu.dot_dimension_numbers<[1], [0], [0], [1], [0, 0, 1, 1], [], []>} : vector<8x4xbf16>, vector<4x32xbf16>, vector<8x32xf32> -> vector<8x32xf32>
    %c0_4 = arith.constant 0 : index
    %c0_5 = arith.constant 0 : index
    %5 = vector.load %arg4[%c0_4, %c0_5] : memref<1x32xf32, #tpu.memory_space<vmem>>, vector<1x32xf32>
    %6 = vector.broadcast %5 : vector<1x32xf32> to vector<8x32xf32>
    %7 = arith.addf %4, %6 : vector<8x32xf32>
    %cst_6 = arith.constant 5.000000e-01 : f32
    %8 = vector.broadcast %cst_6 : f32 to vector<8x32xf32>
    %9 = arith.mulf %8, %7 : vector<8x32xf32>
    %cst_7 = arith.constant 0.707106769 : f32
    %10 = vector.broadcast %cst_7 : f32 to vector<8x32xf32>
    %11 = arith.mulf %7, %10 : vector<8x32xf32>
    %cst_8 = arith.constant 0.000000e+00 : f32
    %12 = vector.broadcast %cst_8 : f32 to vector<8x32xf32>
    %13 = arith.cmpf oge, %11, %12 : vector<8x32xf32>
    %cst_9 = arith.constant 1.000000e+00 : f32
    %cst_10 = arith.constant -1.000000e+00 : f32
    %14 = vector.broadcast %cst_9 : f32 to vector<8x32xf32>
    %15 = vector.broadcast %cst_10 : f32 to vector<8x32xf32>
    %16 = arith.select %13, %14, %15 : vector<8x32xi1>, vector<8x32xf32>
    %17 = math.absf %11 : vector<8x32xf32>
    %cst_11 = arith.constant 0.327591091 : f32
    %18 = vector.broadcast %cst_11 : f32 to vector<8x32xf32>
    %19 = arith.mulf %18, %17 : vector<8x32xf32>
    %cst_12 = arith.constant 1.000000e+00 : f32
    %20 = vector.broadcast %cst_12 : f32 to vector<8x32xf32>
    %21 = arith.addf %20, %19 : vector<8x32xf32>
    %cst_13 = arith.constant 1.000000e+00 : f32
    %22 = vector.broadcast %cst_13 : f32 to vector<8x32xf32>
    %23 = arith.divf %22, %21 : vector<8x32xf32>
    %cst_14 = arith.constant 1.06140542 : f32
    %24 = vector.broadcast %cst_14 : f32 to vector<8x32xf32>
    %25 = arith.mulf %24, %23 : vector<8x32xf32>
    %cst_15 = arith.constant -1.45315206 : f32
    %26 = vector.broadcast %cst_15 : f32 to vector<8x32xf32>
    %27 = arith.addf %25, %26 : vector<8x32xf32>
    %28 = arith.mulf %27, %23 : vector<8x32xf32>
    %cst_16 = arith.constant 1.42141378 : f32
    %29 = vector.broadcast %cst_16 : f32 to vector<8x32xf32>
    %30 = arith.addf %28, %29 : vector<8x32xf32>
    %31 = arith.mulf %30, %23 : vector<8x32xf32>
    %cst_17 = arith.constant -0.284496725 : f32
    %32 = vector.broadcast %cst_17 : f32 to vector<8x32xf32>
    %33 = arith.addf %31, %32 : vector<8x32xf32>
    %34 = arith.mulf %33, %23 : vector<8x32xf32>
    %cst_18 = arith.constant 0.254829586 : f32
    %35 = vector.broadcast %cst_18 : f32 to vector<8x32xf32>
    %36 = arith.addf %34, %35 : vector<8x32xf32>
    %37 = arith.mulf %36, %23 : vector<8x32xf32>
    %cst_19 = arith.constant 0.000000e+00 : f32
    %38 = vector.broadcast %cst_19 : f32 to vector<8x32xf32>
    %39 = arith.subf %38, %17 : vector<8x32xf32>
    %40 = arith.mulf %39, %17 : vector<8x32xf32>
    %41 = math.exp %40 : vector<8x32xf32>
    %42 = arith.mulf %37, %41 : vector<8x32xf32>
    %cst_20 = arith.constant 1.000000e+00 : f32
    %43 = vector.broadcast %cst_20 : f32 to vector<8x32xf32>
    %44 = arith.subf %43, %42 : vector<8x32xf32>
    %45 = arith.mulf %16, %44 : vector<8x32xf32>
    %cst_21 = arith.constant 1.000000e+00 : f32
    %46 = vector.broadcast %cst_21 : f32 to vector<8x32xf32>
    %47 = arith.addf %46, %45 : vector<8x32xf32>
    %48 = arith.mulf %9, %47 : vector<8x32xf32>
    %c0_22 = arith.constant 0 : index
    %c0_23 = arith.constant 0 : index
    %49 = vector.load %arg2[%c0_22, %c0_23] : memref<8x32xf32, #tpu.memory_space<vmem>>, vector<8x32xf32>
    %50 = arith.addf %48, %49 : vector<8x32xf32>
    %51 = tpu.iota {dimensions = array<i32: 0>} : vector<8x8xi32>
    %52 = tpu.iota {dimensions = array<i32: 1>} : vector<8x8xi32>
    %53 = arith.cmpi sle, %52, %51 : vector<8x8xi32>
    %cst_24 = arith.constant 0.353553385 : f32
    %cst_25 = arith.constant 0xFF800000 : f32
    %c0_i32 = arith.constant 0 : i32
    %c2_i32 = arith.constant 2 : i32
    %54 = arith.addi %c0_i32, %c2_i32 : i32
    %c1_i32 = arith.constant 1 : i32
    %55 = scf.for %arg20 = %c0_i32 to %54 step %c1_i32 iter_args(%arg21 = %50) -> (vector<8x32xf32>)  : i32 {
      %65 = arith.truncf %arg21 : vector<8x32xf32> to vector<8x32xbf16>
      %66 = arith.index_cast %arg20 : i32 to index
      %c0_35 = arith.constant 0 : index
      %c0_36 = arith.constant 0 : index
      %67 = vector.load %arg5[%66, %c0_35, %c0_36] : memref<2x32x96xbf16, #tpu.memory_space<vmem>>, vector<1x32x96xbf16>
      %68 = vector.shape_cast %67 : vector<1x32x96xbf16> to vector<32x96xbf16>
      %cst_37 = arith.constant dense<0.000000e+00> : vector<8x96xf32>
      %69 = tpu.matmul %65, %68, %cst_37 {dimension_numbers = #tpu.dot_dimension_numbers<[1], [0], [0], [1], [0, 0, 1, 1], [], []>} : vector<8x32xbf16>, vector<32x96xbf16>, vector<8x96xf32> -> vector<8x96xf32>
      %70 = arith.index_cast %arg20 : i32 to index
      %c0_38 = arith.constant 0 : index
      %c0_39 = arith.constant 0 : index
      %71 = vector.load %arg6[%70, %c0_38, %c0_39] : memref<2x1x96xf32, #tpu.memory_space<vmem>>, vector<1x1x96xf32>
      %72 = vector.shape_cast %71 : vector<1x1x96xf32> to vector<1x96xf32>
      %73 = vector.broadcast %72 : vector<1x96xf32> to vector<8x96xf32>
      %74 = arith.addf %69, %73 : vector<8x96xf32>
      %75 = arith.truncf %74 : vector<8x96xf32> to vector<8x96xbf16>
      %76 = arith.index_cast %arg20 : i32 to index
      %c0_40 = arith.constant 0 : index
      %c0_41 = arith.constant 0 : index
      %c0_42 = arith.constant 0 : index
      %77 = vector.load %arg7[%76, %c0_40, %c0_41, %c0_42] : memref<2x4x8x32xbf16, #tpu.memory_space<vmem>>, vector<1x4x8x32xbf16>
      %78 = vector.shape_cast %77 : vector<1x4x8x32xbf16> to vector<4x8x32xbf16>
      %79 = vector.extract_strided_slice %75 {offsets = [0, 0], sizes = [8, 8], strides = [1, 1]} : vector<8x96xbf16> to vector<8x8xbf16>
      %80 = vector.extract_strided_slice %75 {offsets = [0, 32], sizes = [8, 8], strides = [1, 1]} : vector<8x96xbf16> to vector<8x8xbf16>
      %81 = vector.extract_strided_slice %75 {offsets = [0, 64], sizes = [8, 8], strides = [1, 1]} : vector<8x96xbf16> to vector<8x8xbf16>
      %cst_43 = arith.constant dense<0.000000e+00> : vector<8x8xf32>
      %82 = tpu.matmul %79, %80, %cst_43 {dimension_numbers = #tpu.dot_dimension_numbers<[1], [1], [0], [0], [0, 0, 1, 0], [], []>} : vector<8x8xbf16>, vector<8x8xbf16>, vector<8x8xf32> -> vector<8x8xf32>
      %83 = vector.broadcast %cst_24 : f32 to vector<8x8xf32>
      %84 = arith.mulf %82, %83 : vector<8x8xf32>
      %85 = vector.broadcast %cst_25 : f32 to vector<8x8xf32>
      %86 = arith.select %53, %84, %85 : vector<8x8xi1>, vector<8x8xf32>
      %cst_44 = arith.constant dense<0xFF800000> : vector<8xf32>
      %87 = vector.multi_reduction <maximumf>, %86, %cst_44 [1] : vector<8x8xf32> to vector<8xf32>
      %88 = vector.shape_cast %87 : vector<8xf32> to vector<8x1xf32>
      %89 = vector.broadcast %88 : vector<8x1xf32> to vector<8x8xf32>
      %90 = arith.subf %86, %89 : vector<8x8xf32>
      %91 = math.exp %90 : vector<8x8xf32>
      %cst_45 = arith.constant dense<0.000000e+00> : vector<8xf32>
      %92 = vector.multi_reduction <add>, %91, %cst_45 [1] : vector<8x8xf32> to vector<8xf32>
      %93 = vector.shape_cast %92 : vector<8xf32> to vector<8x1xf32>
      %94 = tpu.reciprocal %93 {approx = true} : vector<8x1xf32> -> vector<8x1xf32>
      %95 = vector.broadcast %94 : vector<8x1xf32> to vector<8x8xf32>
      %96 = arith.mulf %91, %95 : vector<8x8xf32>
      %97 = arith.truncf %96 : vector<8x8xf32> to vector<8x8xbf16>
      %cst_46 = arith.constant dense<0.000000e+00> : vector<8x8xf32>
      %98 = tpu.matmul %97, %81, %cst_46 {dimension_numbers = #tpu.dot_dimension_numbers<[1], [0], [0], [1], [0, 0, 1, 1], [], []>} : vector<8x8xbf16>, vector<8x8xbf16>, vector<8x8xf32> -> vector<8x8xf32>
      %99 = arith.truncf %98 : vector<8x8xf32> to vector<8x8xbf16>
      %100 = vector.extract_strided_slice %78 {offsets = [0, 0, 0], sizes = [1, 8, 32], strides = [1, 1, 1]} : vector<4x8x32xbf16> to vector<1x8x32xbf16>
      %101 = vector.shape_cast %100 : vector<1x8x32xbf16> to vector<8x32xbf16>
      %cst_47 = arith.constant dense<0.000000e+00> : vector<8x32xf32>
      %102 = tpu.matmul %99, %101, %cst_47 {dimension_numbers = #tpu.dot_dimension_numbers<[1], [0], [0], [1], [0, 0, 1, 1], [], []>} : vector<8x8xbf16>, vector<8x32xbf16>, vector<8x32xf32> -> vector<8x32xf32>
      %103 = vector.extract_strided_slice %75 {offsets = [0, 8], sizes = [8, 8], strides = [1, 1]} : vector<8x96xbf16> to vector<8x8xbf16>
      %104 = vector.extract_strided_slice %75 {offsets = [0, 40], sizes = [8, 8], strides = [1, 1]} : vector<8x96xbf16> to vector<8x8xbf16>
      %105 = vector.extract_strided_slice %75 {offsets = [0, 72], sizes = [8, 8], strides = [1, 1]} : vector<8x96xbf16> to vector<8x8xbf16>
      %cst_48 = arith.constant dense<0.000000e+00> : vector<8x8xf32>
      %106 = tpu.matmul %103, %104, %cst_48 {dimension_numbers = #tpu.dot_dimension_numbers<[1], [1], [0], [0], [0, 0, 1, 0], [], []>} : vector<8x8xbf16>, vector<8x8xbf16>, vector<8x8xf32> -> vector<8x8xf32>
      %107 = vector.broadcast %cst_24 : f32 to vector<8x8xf32>
      %108 = arith.mulf %106, %107 : vector<8x8xf32>
      %109 = vector.broadcast %cst_25 : f32 to vector<8x8xf32>
      %110 = arith.select %53, %108, %109 : vector<8x8xi1>, vector<8x8xf32>
      %cst_49 = arith.constant dense<0xFF800000> : vector<8xf32>
      %111 = vector.multi_reduction <maximumf>, %110, %cst_49 [1] : vector<8x8xf32> to vector<8xf32>
      %112 = vector.shape_cast %111 : vector<8xf32> to vector<8x1xf32>
      %113 = vector.broadcast %112 : vector<8x1xf32> to vector<8x8xf32>
      %114 = arith.subf %110, %113 : vector<8x8xf32>
      %115 = math.exp %114 : vector<8x8xf32>
      %cst_50 = arith.constant dense<0.000000e+00> : vector<8xf32>
      %116 = vector.multi_reduction <add>, %115, %cst_50 [1] : vector<8x8xf32> to vector<8xf32>
      %117 = vector.shape_cast %116 : vector<8xf32> to vector<8x1xf32>
      %118 = tpu.reciprocal %117 {approx = true} : vector<8x1xf32> -> vector<8x1xf32>
      %119 = vector.broadcast %118 : vector<8x1xf32> to vector<8x8xf32>
      %120 = arith.mulf %115, %119 : vector<8x8xf32>
      %121 = arith.truncf %120 : vector<8x8xf32> to vector<8x8xbf16>
      %cst_51 = arith.constant dense<0.000000e+00> : vector<8x8xf32>
      %122 = tpu.matmul %121, %105, %cst_51 {dimension_numbers = #tpu.dot_dimension_numbers<[1], [0], [0], [1], [0, 0, 1, 1], [], []>} : vector<8x8xbf16>, vector<8x8xbf16>, vector<8x8xf32> -> vector<8x8xf32>
      %123 = arith.truncf %122 : vector<8x8xf32> to vector<8x8xbf16>
      %124 = vector.extract_strided_slice %78 {offsets = [1, 0, 0], sizes = [1, 8, 32], strides = [1, 1, 1]} : vector<4x8x32xbf16> to vector<1x8x32xbf16>
      %125 = vector.shape_cast %124 : vector<1x8x32xbf16> to vector<8x32xbf16>
      %cst_52 = arith.constant dense<0.000000e+00> : vector<8x32xf32>
      %126 = tpu.matmul %123, %125, %cst_52 {dimension_numbers = #tpu.dot_dimension_numbers<[1], [0], [0], [1], [0, 0, 1, 1], [], []>} : vector<8x8xbf16>, vector<8x32xbf16>, vector<8x32xf32> -> vector<8x32xf32>
      %127 = arith.addf %102, %126 : vector<8x32xf32>
      %128 = vector.extract_strided_slice %75 {offsets = [0, 16], sizes = [8, 8], strides = [1, 1]} : vector<8x96xbf16> to vector<8x8xbf16>
      %129 = vector.extract_strided_slice %75 {offsets = [0, 48], sizes = [8, 8], strides = [1, 1]} : vector<8x96xbf16> to vector<8x8xbf16>
      %130 = vector.extract_strided_slice %75 {offsets = [0, 80], sizes = [8, 8], strides = [1, 1]} : vector<8x96xbf16> to vector<8x8xbf16>
      %cst_53 = arith.constant dense<0.000000e+00> : vector<8x8xf32>
      %131 = tpu.matmul %128, %129, %cst_53 {dimension_numbers = #tpu.dot_dimension_numbers<[1], [1], [0], [0], [0, 0, 1, 0], [], []>} : vector<8x8xbf16>, vector<8x8xbf16>, vector<8x8xf32> -> vector<8x8xf32>
      %132 = vector.broadcast %cst_24 : f32 to vector<8x8xf32>
      %133 = arith.mulf %131, %132 : vector<8x8xf32>
      %134 = vector.broadcast %cst_25 : f32 to vector<8x8xf32>
      %135 = arith.select %53, %133, %134 : vector<8x8xi1>, vector<8x8xf32>
      %cst_54 = arith.constant dense<0xFF800000> : vector<8xf32>
      %136 = vector.multi_reduction <maximumf>, %135, %cst_54 [1] : vector<8x8xf32> to vector<8xf32>
      %137 = vector.shape_cast %136 : vector<8xf32> to vector<8x1xf32>
      %138 = vector.broadcast %137 : vector<8x1xf32> to vector<8x8xf32>
      %139 = arith.subf %135, %138 : vector<8x8xf32>
      %140 = math.exp %139 : vector<8x8xf32>
      %cst_55 = arith.constant dense<0.000000e+00> : vector<8xf32>
      %141 = vector.multi_reduction <add>, %140, %cst_55 [1] : vector<8x8xf32> to vector<8xf32>
      %142 = vector.shape_cast %141 : vector<8xf32> to vector<8x1xf32>
      %143 = tpu.reciprocal %142 {approx = true} : vector<8x1xf32> -> vector<8x1xf32>
      %144 = vector.broadcast %143 : vector<8x1xf32> to vector<8x8xf32>
      %145 = arith.mulf %140, %144 : vector<8x8xf32>
      %146 = arith.truncf %145 : vector<8x8xf32> to vector<8x8xbf16>
      %cst_56 = arith.constant dense<0.000000e+00> : vector<8x8xf32>
      %147 = tpu.matmul %146, %130, %cst_56 {dimension_numbers = #tpu.dot_dimension_numbers<[1], [0], [0], [1], [0, 0, 1, 1], [], []>} : vector<8x8xbf16>, vector<8x8xbf16>, vector<8x8xf32> -> vector<8x8xf32>
      %148 = arith.truncf %147 : vector<8x8xf32> to vector<8x8xbf16>
      %149 = vector.extract_strided_slice %78 {offsets = [2, 0, 0], sizes = [1, 8, 32], strides = [1, 1, 1]} : vector<4x8x32xbf16> to vector<1x8x32xbf16>
      %150 = vector.shape_cast %149 : vector<1x8x32xbf16> to vector<8x32xbf16>
      %cst_57 = arith.constant dense<0.000000e+00> : vector<8x32xf32>
      %151 = tpu.matmul %148, %150, %cst_57 {dimension_numbers = #tpu.dot_dimension_numbers<[1], [0], [0], [1], [0, 0, 1, 1], [], []>} : vector<8x8xbf16>, vector<8x32xbf16>, vector<8x32xf32> -> vector<8x32xf32>
      %152 = arith.addf %127, %151 : vector<8x32xf32>
      %153 = vector.extract_strided_slice %75 {offsets = [0, 24], sizes = [8, 8], strides = [1, 1]} : vector<8x96xbf16> to vector<8x8xbf16>
      %154 = vector.extract_strided_slice %75 {offsets = [0, 56], sizes = [8, 8], strides = [1, 1]} : vector<8x96xbf16> to vector<8x8xbf16>
      %155 = vector.extract_strided_slice %75 {offsets = [0, 88], sizes = [8, 8], strides = [1, 1]} : vector<8x96xbf16> to vector<8x8xbf16>
      %cst_58 = arith.constant dense<0.000000e+00> : vector<8x8xf32>
      %156 = tpu.matmul %153, %154, %cst_58 {dimension_numbers = #tpu.dot_dimension_numbers<[1], [1], [0], [0], [0, 0, 1, 0], [], []>} : vector<8x8xbf16>, vector<8x8xbf16>, vector<8x8xf32> -> vector<8x8xf32>
      %157 = vector.broadcast %cst_24 : f32 to vector<8x8xf32>
      %158 = arith.mulf %156, %157 : vector<8x8xf32>
      %159 = vector.broadcast %cst_25 : f32 to vector<8x8xf32>
      %160 = arith.select %53, %158, %159 : vector<8x8xi1>, vector<8x8xf32>
      %cst_59 = arith.constant dense<0xFF800000> : vector<8xf32>
      %161 = vector.multi_reduction <maximumf>, %160, %cst_59 [1] : vector<8x8xf32> to vector<8xf32>
      %162 = vector.shape_cast %161 : vector<8xf32> to vector<8x1xf32>
      %163 = vector.broadcast %162 : vector<8x1xf32> to vector<8x8xf32>
      %164 = arith.subf %160, %163 : vector<8x8xf32>
      %165 = math.exp %164 : vector<8x8xf32>
      %cst_60 = arith.constant dense<0.000000e+00> : vector<8xf32>
      %166 = vector.multi_reduction <add>, %165, %cst_60 [1] : vector<8x8xf32> to vector<8xf32>
      %167 = vector.shape_cast %166 : vector<8xf32> to vector<8x1xf32>
      %168 = tpu.reciprocal %167 {approx = true} : vector<8x1xf32> -> vector<8x1xf32>
      %169 = vector.broadcast %168 : vector<8x1xf32> to vector<8x8xf32>
      %170 = arith.mulf %165, %169 : vector<8x8xf32>
      %171 = arith.truncf %170 : vector<8x8xf32> to vector<8x8xbf16>
      %cst_61 = arith.constant dense<0.000000e+00> : vector<8x8xf32>
      %172 = tpu.matmul %171, %155, %cst_61 {dimension_numbers = #tpu.dot_dimension_numbers<[1], [0], [0], [1], [0, 0, 1, 1], [], []>} : vector<8x8xbf16>, vector<8x8xbf16>, vector<8x8xf32> -> vector<8x8xf32>
      %173 = arith.truncf %172 : vector<8x8xf32> to vector<8x8xbf16>
      %174 = vector.extract_strided_slice %78 {offsets = [3, 0, 0], sizes = [1, 8, 32], strides = [1, 1, 1]} : vector<4x8x32xbf16> to vector<1x8x32xbf16>
      %175 = vector.shape_cast %174 : vector<1x8x32xbf16> to vector<8x32xbf16>
      %cst_62 = arith.constant dense<0.000000e+00> : vector<8x32xf32>
      %176 = tpu.matmul %173, %175, %cst_62 {dimension_numbers = #tpu.dot_dimension_numbers<[1], [0], [0], [1], [0, 0, 1, 1], [], []>} : vector<8x8xbf16>, vector<8x32xbf16>, vector<8x32xf32> -> vector<8x32xf32>
      %177 = arith.addf %152, %176 : vector<8x32xf32>
      %178 = arith.index_cast %arg20 : i32 to index
      %c0_63 = arith.constant 0 : index
      %c0_64 = arith.constant 0 : index
      %179 = vector.load %arg8[%178, %c0_63, %c0_64] : memref<2x1x32xf32, #tpu.memory_space<vmem>>, vector<1x1x32xf32>
      %180 = vector.shape_cast %179 : vector<1x1x32xf32> to vector<1x32xf32>
      %181 = vector.broadcast %180 : vector<1x32xf32> to vector<8x32xf32>
      %182 = arith.addf %177, %181 : vector<8x32xf32>
      %183 = arith.addf %arg21, %182 : vector<8x32xf32>
      %184 = arith.index_cast %arg20 : i32 to index
      %c0_65 = arith.constant 0 : index
      %c0_66 = arith.constant 0 : index
      %185 = vector.load %arg9[%184, %c0_65, %c0_66] : memref<2x1x32xf32, #tpu.memory_space<vmem>>, vector<1x1x32xf32>
      %186 = vector.shape_cast %185 : vector<1x1x32xf32> to vector<1x32xf32>
      %187 = arith.index_cast %arg20 : i32 to index
      %c0_67 = arith.constant 0 : index
      %c0_68 = arith.constant 0 : index
      %188 = vector.load %arg10[%187, %c0_67, %c0_68] : memref<2x1x32xf32, #tpu.memory_space<vmem>>, vector<1x1x32xf32>
      %189 = vector.shape_cast %188 : vector<1x1x32xf32> to vector<1x32xf32>
      %cst_69 = arith.constant dense<0.000000e+00> : vector<8xf32>
      %190 = vector.multi_reduction <add>, %183, %cst_69 [1] : vector<8x32xf32> to vector<8xf32>
      %191 = vector.shape_cast %190 : vector<8xf32> to vector<8x1xf32>
      %cst_70 = arith.constant 3.200000e+01 : f32
      %192 = vector.broadcast %cst_70 : f32 to vector<8x1xf32>
      %193 = arith.divf %191, %192 : vector<8x1xf32>
      %194 = vector.broadcast %193 : vector<8x1xf32> to vector<8x32xf32>
      %195 = arith.subf %183, %194 : vector<8x32xf32>
      %196 = arith.mulf %195, %195 : vector<8x32xf32>
      %cst_71 = arith.constant dense<0.000000e+00> : vector<8xf32>
      %197 = vector.multi_reduction <add>, %196, %cst_71 [1] : vector<8x32xf32> to vector<8xf32>
      %198 = vector.shape_cast %197 : vector<8xf32> to vector<8x1xf32>
      %cst_72 = arith.constant 3.200000e+01 : f32
      %199 = vector.broadcast %cst_72 : f32 to vector<8x1xf32>
      %200 = arith.divf %198, %199 : vector<8x1xf32>
      %201 = vector.broadcast %193 : vector<8x1xf32> to vector<8x32xf32>
      %202 = arith.subf %183, %201 : vector<8x32xf32>
      %cst_73 = arith.constant 9.99999974E-6 : f32
      %203 = vector.broadcast %cst_73 : f32 to vector<8x1xf32>
      %204 = arith.addf %200, %203 : vector<8x1xf32>
      %205 = math.rsqrt %204 : vector<8x1xf32>
      %206 = vector.broadcast %205 : vector<8x1xf32> to vector<8x32xf32>
      %207 = arith.mulf %202, %206 : vector<8x32xf32>
      %208 = vector.broadcast %186 : vector<1x32xf32> to vector<8x32xf32>
      %209 = arith.mulf %207, %208 : vector<8x32xf32>
      %210 = vector.broadcast %189 : vector<1x32xf32> to vector<8x32xf32>
      %211 = arith.addf %209, %210 : vector<8x32xf32>
      %212 = arith.truncf %211 : vector<8x32xf32> to vector<8x32xbf16>
      %213 = arith.index_cast %arg20 : i32 to index
      %c0_74 = arith.constant 0 : index
      %c0_75 = arith.constant 0 : index
      %214 = vector.load %arg11[%213, %c0_74, %c0_75] : memref<2x32x64xbf16, #tpu.memory_space<vmem>>, vector<1x32x64xbf16>
      %215 = vector.shape_cast %214 : vector<1x32x64xbf16> to vector<32x64xbf16>
      %cst_76 = arith.constant dense<0.000000e+00> : vector<8x64xf32>
      %216 = tpu.matmul %212, %215, %cst_76 {dimension_numbers = #tpu.dot_dimension_numbers<[1], [0], [0], [1], [0, 0, 1, 1], [], []>} : vector<8x32xbf16>, vector<32x64xbf16>, vector<8x64xf32> -> vector<8x64xf32>
      %217 = arith.index_cast %arg20 : i32 to index
      %c0_77 = arith.constant 0 : index
      %c0_78 = arith.constant 0 : index
      %218 = vector.load %arg12[%217, %c0_77, %c0_78] : memref<2x1x64xf32, #tpu.memory_space<vmem>>, vector<1x1x64xf32>
      %219 = vector.shape_cast %218 : vector<1x1x64xf32> to vector<1x64xf32>
      %220 = vector.broadcast %219 : vector<1x64xf32> to vector<8x64xf32>
      %221 = arith.addf %216, %220 : vector<8x64xf32>
      %cst_79 = arith.constant 5.000000e-01 : f32
      %222 = vector.broadcast %cst_79 : f32 to vector<8x64xf32>
      %223 = arith.mulf %222, %221 : vector<8x64xf32>
      %cst_80 = arith.constant 0.707106769 : f32
      %224 = vector.broadcast %cst_80 : f32 to vector<8x64xf32>
      %225 = arith.mulf %221, %224 : vector<8x64xf32>
      %cst_81 = arith.constant 0.000000e+00 : f32
      %226 = vector.broadcast %cst_81 : f32 to vector<8x64xf32>
      %227 = arith.cmpf oge, %225, %226 : vector<8x64xf32>
      %cst_82 = arith.constant 1.000000e+00 : f32
      %cst_83 = arith.constant -1.000000e+00 : f32
      %228 = vector.broadcast %cst_82 : f32 to vector<8x64xf32>
      %229 = vector.broadcast %cst_83 : f32 to vector<8x64xf32>
      %230 = arith.select %227, %228, %229 : vector<8x64xi1>, vector<8x64xf32>
      %231 = math.absf %225 : vector<8x64xf32>
      %cst_84 = arith.constant 0.327591091 : f32
      %232 = vector.broadcast %cst_84 : f32 to vector<8x64xf32>
      %233 = arith.mulf %232, %231 : vector<8x64xf32>
      %cst_85 = arith.constant 1.000000e+00 : f32
      %234 = vector.broadcast %cst_85 : f32 to vector<8x64xf32>
      %235 = arith.addf %234, %233 : vector<8x64xf32>
      %cst_86 = arith.constant 1.000000e+00 : f32
      %236 = vector.broadcast %cst_86 : f32 to vector<8x64xf32>
      %237 = arith.divf %236, %235 : vector<8x64xf32>
      %cst_87 = arith.constant 1.06140542 : f32
      %238 = vector.broadcast %cst_87 : f32 to vector<8x64xf32>
      %239 = arith.mulf %238, %237 : vector<8x64xf32>
      %cst_88 = arith.constant -1.45315206 : f32
      %240 = vector.broadcast %cst_88 : f32 to vector<8x64xf32>
      %241 = arith.addf %239, %240 : vector<8x64xf32>
      %242 = arith.mulf %241, %237 : vector<8x64xf32>
      %cst_89 = arith.constant 1.42141378 : f32
      %243 = vector.broadcast %cst_89 : f32 to vector<8x64xf32>
      %244 = arith.addf %242, %243 : vector<8x64xf32>
      %245 = arith.mulf %244, %237 : vector<8x64xf32>
      %cst_90 = arith.constant -0.284496725 : f32
      %246 = vector.broadcast %cst_90 : f32 to vector<8x64xf32>
      %247 = arith.addf %245, %246 : vector<8x64xf32>
      %248 = arith.mulf %247, %237 : vector<8x64xf32>
      %cst_91 = arith.constant 0.254829586 : f32
      %249 = vector.broadcast %cst_91 : f32 to vector<8x64xf32>
      %250 = arith.addf %248, %249 : vector<8x64xf32>
      %251 = arith.mulf %250, %237 : vector<8x64xf32>
      %cst_92 = arith.constant 0.000000e+00 : f32
      %252 = vector.broadcast %cst_92 : f32 to vector<8x64xf32>
      %253 = arith.subf %252, %231 : vector<8x64xf32>
      %254 = arith.mulf %253, %231 : vector<8x64xf32>
      %255 = math.exp %254 : vector<8x64xf32>
      %256 = arith.mulf %251, %255 : vector<8x64xf32>
      %cst_93 = arith.constant 1.000000e+00 : f32
      %257 = vector.broadcast %cst_93 : f32 to vector<8x64xf32>
      %258 = arith.subf %257, %256 : vector<8x64xf32>
      %259 = arith.mulf %230, %258 : vector<8x64xf32>
      %cst_94 = arith.constant 1.000000e+00 : f32
      %260 = vector.broadcast %cst_94 : f32 to vector<8x64xf32>
      %261 = arith.addf %260, %259 : vector<8x64xf32>
      %262 = arith.mulf %223, %261 : vector<8x64xf32>
      %263 = arith.truncf %262 : vector<8x64xf32> to vector<8x64xbf16>
      %264 = arith.index_cast %arg20 : i32 to index
      %c0_95 = arith.constant 0 : index
      %c0_96 = arith.constant 0 : index
      %265 = vector.load %arg13[%264, %c0_95, %c0_96] : memref<2x64x32xbf16, #tpu.memory_space<vmem>>, vector<1x64x32xbf16>
      %266 = vector.shape_cast %265 : vector<1x64x32xbf16> to vector<64x32xbf16>
      %cst_97 = arith.constant dense<0.000000e+00> : vector<8x32xf32>
      %267 = tpu.matmul %263, %266, %cst_97 {dimension_numbers = #tpu.dot_dimension_numbers<[1], [0], [0], [1], [0, 0, 1, 1], [], []>} : vector<8x64xbf16>, vector<64x32xbf16>, vector<8x32xf32> -> vector<8x32xf32>
      %268 = arith.index_cast %arg20 : i32 to index
      %c0_98 = arith.constant 0 : index
      %c0_99 = arith.constant 0 : index
      %269 = vector.load %arg14[%268, %c0_98, %c0_99] : memref<2x1x32xf32, #tpu.memory_space<vmem>>, vector<1x1x32xf32>
      %270 = vector.shape_cast %269 : vector<1x1x32xf32> to vector<1x32xf32>
      %271 = vector.broadcast %270 : vector<1x32xf32> to vector<8x32xf32>
      %272 = arith.addf %267, %271 : vector<8x32xf32>
      %273 = arith.addf %211, %272 : vector<8x32xf32>
      %274 = arith.index_cast %arg20 : i32 to index
      %c0_100 = arith.constant 0 : index
      %c0_101 = arith.constant 0 : index
      %275 = vector.load %arg15[%274, %c0_100, %c0_101] : memref<2x1x32xf32, #tpu.memory_space<vmem>>, vector<1x1x32xf32>
      %276 = vector.shape_cast %275 : vector<1x1x32xf32> to vector<1x32xf32>
      %277 = arith.index_cast %arg20 : i32 to index
      %c0_102 = arith.constant 0 : index
      %c0_103 = arith.constant 0 : index
      %278 = vector.load %arg16[%277, %c0_102, %c0_103] : memref<2x1x32xf32, #tpu.memory_space<vmem>>, vector<1x1x32xf32>
      %279 = vector.shape_cast %278 : vector<1x1x32xf32> to vector<1x32xf32>
      %cst_104 = arith.constant dense<0.000000e+00> : vector<8xf32>
      %280 = vector.multi_reduction <add>, %273, %cst_104 [1] : vector<8x32xf32> to vector<8xf32>
      %281 = vector.shape_cast %280 : vector<8xf32> to vector<8x1xf32>
      %cst_105 = arith.constant 3.200000e+01 : f32
      %282 = vector.broadcast %cst_105 : f32 to vector<8x1xf32>
      %283 = arith.divf %281, %282 : vector<8x1xf32>
      %284 = vector.broadcast %283 : vector<8x1xf32> to vector<8x32xf32>
      %285 = arith.subf %273, %284 : vector<8x32xf32>
      %286 = arith.mulf %285, %285 : vector<8x32xf32>
      %cst_106 = arith.constant dense<0.000000e+00> : vector<8xf32>
      %287 = vector.multi_reduction <add>, %286, %cst_106 [1] : vector<8x32xf32> to vector<8xf32>
      %288 = vector.shape_cast %287 : vector<8xf32> to vector<8x1xf32>
      %cst_107 = arith.constant 3.200000e+01 : f32
      %289 = vector.broadcast %cst_107 : f32 to vector<8x1xf32>
      %290 = arith.divf %288, %289 : vector<8x1xf32>
      %291 = vector.broadcast %283 : vector<8x1xf32> to vector<8x32xf32>
      %292 = arith.subf %273, %291 : vector<8x32xf32>
      %cst_108 = arith.constant 9.99999974E-6 : f32
      %293 = vector.broadcast %cst_108 : f32 to vector<8x1xf32>
      %294 = arith.addf %290, %293 : vector<8x1xf32>
      %295 = math.rsqrt %294 : vector<8x1xf32>
      %296 = vector.broadcast %295 : vector<8x1xf32> to vector<8x32xf32>
      %297 = arith.mulf %292, %296 : vector<8x32xf32>
      %298 = vector.broadcast %276 : vector<1x32xf32> to vector<8x32xf32>
      %299 = arith.mulf %297, %298 : vector<8x32xf32>
      %300 = vector.broadcast %279 : vector<1x32xf32> to vector<8x32xf32>
      %301 = arith.addf %299, %300 : vector<8x32xf32>
      scf.yield %301 : vector<8x32xf32>
    }
    %c2_i32_26 = arith.constant 2 : i32
    %56 = arith.truncf %55 : vector<8x32xf32> to vector<8x32xbf16>
    %c0_27 = arith.constant 0 : index
    %c0_28 = arith.constant 0 : index
    %57 = vector.load %arg17[%c0_27, %c0_28] : memref<32x128xbf16, #tpu.memory_space<vmem>>, vector<32x128xbf16>
    %cst_29 = arith.constant dense<0.000000e+00> : vector<8x128xf32>
    %58 = tpu.matmul %56, %57, %cst_29 {dimension_numbers = #tpu.dot_dimension_numbers<[1], [0], [0], [1], [0, 0, 1, 1], [], []>} : vector<8x32xbf16>, vector<32x128xbf16>, vector<8x128xf32> -> vector<8x128xf32>
    %c0_30 = arith.constant 0 : index
    %c0_31 = arith.constant 0 : index
    %59 = vector.load %arg18[%c0_30, %c0_31] : memref<1x128xf32, #tpu.memory_space<vmem>>, vector<1x128xf32>
    %60 = vector.broadcast %59 : vector<1x128xf32> to vector<8x128xf32>
    %61 = arith.addf %58, %60 : vector<8x128xf32>
    %c0_32 = arith.constant 0 : index
    %c0_33 = arith.constant 0 : index
    %c0_34 = arith.constant 0 : index
    %62 = vector.load %arg19[%c0_32, %c0_33, %c0_34] : memref<1x8x128xf32, #tpu.memory_space<vmem>>, vector<1x8x128xf32>
    %63 = vector.shape_cast %62 : vector<1x8x128xf32> to vector<8x128xf32>
    %64 = vector.shape_cast %61 : vector<8x128xf32> to vector<1x8x128xf32>
    tpu.vector_store %arg19[%c0_32, %c0_33, %c0_34], %64 {strides = array<i32>} : memref<1x8x128xf32, #tpu.memory_space<vmem>>, vector<1x8x128xf32>,
    return
  }
  func.func @transform_0(%arg0: i32) -> (i32, i32, i32) {
    %c0_i32 = arith.constant 0 : i32
    %c0_i32_0 = arith.constant 0 : i32
    %c0_i32_1 = arith.constant 0 : i32
    return %arg0, %c0_i32, %c0_i32_0 : i32, i32, i32
  }
  func.func @transform_1(%arg0: i32) -> (i32, i32) {
    %c0_i32 = arith.constant 0 : i32
    %c0_i32_0 = arith.constant 0 : i32
    %c0_i32_1 = arith.constant 0 : i32
    return %c0_i32, %c0_i32_0 : i32, i32
  }
  func.func @transform_2(%arg0: i32) -> (i32, i32) {
    %c0_i32 = arith.constant 0 : i32
    %c0_i32_0 = arith.constant 0 : i32
    %c0_i32_1 = arith.constant 0 : i32
    return %c0_i32, %c0_i32_0 : i32, i32
  }
  func.func @transform_3(%arg0: i32) -> (i32, i32) {
    %c0_i32 = arith.constant 0 : i32
    %c0_i32_0 = arith.constant 0 : i32
    %c0_i32_1 = arith.constant 0 : i32
    return %c0_i32, %c0_i32_0 : i32, i32
  }
  func.func @transform_4(%arg0: i32) -> (i32, i32, i32) {
    %c0_i32 = arith.constant 0 : i32
    %c0_i32_0 = arith.constant 0 : i32
    %c0_i32_1 = arith.constant 0 : i32
    %c0_i32_2 = arith.constant 0 : i32
    return %c0_i32, %c0_i32_0, %c0_i32_1 : i32, i32, i32
  }
  func.func @transform_5(%arg0: i32) -> (i32, i32, i32) {
    %c0_i32 = arith.constant 0 : i32
    %c0_i32_0 = arith.constant 0 : i32
    %c0_i32_1 = arith.constant 0 : i32
    %c0_i32_2 = arith.constant 0 : i32
    return %c0_i32, %c0_i32_0, %c0_i32_1 : i32, i32, i32
  }
  func.func @transform_6(%arg0: i32) -> (i32, i32, i32, i32) {
    %c0_i32 = arith.constant 0 : i32
    %c0_i32_0 = arith.constant 0 : i32
    %c0_i32_1 = arith.constant 0 : i32
    %c0_i32_2 = arith.constant 0 : i32
    %c0_i32_3 = arith.constant 0 : i32
    return %c0_i32, %c0_i32_0, %c0_i32_1, %c0_i32_2 : i32, i32, i32, i32
  }
  func.func @transform_7(%arg0: i32) -> (i32, i32, i32) {
    %c0_i32 = arith.constant 0 : i32
    %c0_i32_0 = arith.constant 0 : i32
    %c0_i32_1 = arith.constant 0 : i32
    %c0_i32_2 = arith.constant 0 : i32
    return %c0_i32, %c0_i32_0, %c0_i32_1 : i32, i32, i32
  }
  func.func @transform_8(%arg0: i32) -> (i32, i32, i32) {
    %c0_i32 = arith.constant 0 : i32
    %c0_i32_0 = arith.constant 0 : i32
    %c0_i32_1 = arith.constant 0 : i32
    %c0_i32_2 = arith.constant 0 : i32
    return %c0_i32, %c0_i32_0, %c0_i32_1 : i32, i32, i32
  }
  func.func @transform_9(%arg0: i32) -> (i32, i32, i32) {
    %c0_i32 = arith.constant 0 : i32
    %c0_i32_0 = arith.constant 0 : i32
    %c0_i32_1 = arith.constant 0 : i32
    %c0_i32_2 = arith.constant 0 : i32
    return %c0_i32, %c0_i32_0, %c0_i32_1 : i32, i32, i32
  }
  func.func @transform_10(%arg0: i32) -> (i32, i32, i32) {
    %c0_i32 = arith.constant 0 : i32
    %c0_i32_0 = arith.constant 0 : i32
    %c0_i32_1 = arith.constant 0 : i32
    %c0_i32_2 = arith.constant 0 : i32
    return %c0_i32, %c0_i32_0, %c0_i32_1 : i32, i32, i32
  }
  func.func @transform_11(%arg0: i32) -> (i32, i32, i32) {
    %c0_i32 = arith.constant 0 : i32
    %c0_i32_0 = arith.constant 0 : i32
    %c0_i32_1 = arith.constant 0 : i32
    %c0_i32_2 = arith.constant 0 : i32
    return %c0_i32, %c0_i32_0, %c0_i32_1 : i32, i32, i32
  }
  func.func @transform_12(%arg0: i32) -> (i32, i32, i32) {
    %c0_i32 = arith.constant 0 : i32
    %c0_i32_0 = arith.constant 0 : i32
    %c0_i32_1 = arith.constant 0 : i32
    %c0_i32_2 = arith.constant 0 : i32
    return %c0_i32, %c0_i32_0, %c0_i32_1 : i32, i32, i32
  }
  func.func @transform_13(%arg0: i32) -> (i32, i32, i32) {
    %c0_i32 = arith.constant 0 : i32
    %c0_i32_0 = arith.constant 0 : i32
    %c0_i32_1 = arith.constant 0 : i32
    %c0_i32_2 = arith.constant 0 : i32
    return %c0_i32, %c0_i32_0, %c0_i32_1 : i32, i32, i32
  }
  func.func @transform_14(%arg0: i32) -> (i32, i32, i32) {
    %c0_i32 = arith.constant 0 : i32
    %c0_i32_0 = arith.constant 0 : i32
    %c0_i32_1 = arith.constant 0 : i32
    %c0_i32_2 = arith.constant 0 : i32
    return %c0_i32, %c0_i32_0, %c0_i32_1 : i32, i32, i32
  }
  func.func @transform_15(%arg0: i32) -> (i32, i32, i32) {
    %c0_i32 = arith.constant 0 : i32
    %c0_i32_0 = arith.constant 0 : i32
    %c0_i32_1 = arith.constant 0 : i32
    %c0_i32_2 = arith.constant 0 : i32
    return %c0_i32, %c0_i32_0, %c0_i32_1 : i32, i32, i32
  }
  func.func @transform_16(%arg0: i32) -> (i32, i32) {
    %c0_i32 = arith.constant 0 : i32
    %c0_i32_0 = arith.constant 0 : i32
    %c0_i32_1 = arith.constant 0 : i32
    return %c0_i32, %c0_i32_0 : i32, i32
  }
  func.func @transform_17(%arg0: i32) -> (i32, i32) {
    %c0_i32 = arith.constant 0 : i32
    %c0_i32_0 = arith.constant 0 : i32
    %c0_i32_1 = arith.constant 0 : i32
    return %c0_i32, %c0_i32_0 : i32, i32
  }
  func.func @transform_18(%arg0: i32) -> (i32, i32, i32) {
    %c0_i32 = arith.constant 0 : i32
    %c0_i32_0 = arith.constant 0 : i32
    %c0_i32_1 = arith.constant 0 : i32
    return %arg0, %c0_i32, %c0_i32_0 : i32, i32, i32
  }
}

</mosaic_0001>

<llo_original>
// kernel: tpu_custom_call.1
$region0: #{tpu_custom_call.1}
  #allocation0 [shape = 'u32[]', space=smem, size = 0x4, offset = 0x4, fixed_abs, tag = 'smem constant byte address 0x4 - core index']
  #allocation1 [shape = 'u32[144,128]{1,0:T(1,128)}', space=vmem, size = 0x12000, scoped, tag = 'internal scratch']
  %s0 = inlined_call_operand.vmem [shape: f32[2,8,4], index: 0, kind: input, shape index: {}]
  %s1 = inlined_call_operand.vmem [shape: f32[8,32], index: 1, kind: input, shape index: {}]
  %s2 = inlined_call_operand.vmem [shape: bf16[4,32], index: 2, kind: input, shape index: {}]
  %s3 = inlined_call_operand.vmem [shape: f32[1,32], index: 3, kind: input, shape index: {}]
  %s4 = inlined_call_operand.vmem [shape: bf16[2,32,96], index: 4, kind: input, shape index: {}]
  %s5 = inlined_call_operand.vmem [shape: f32[2,1,96], index: 5, kind: input, shape index: {}]
  %s6 = inlined_call_operand.vmem [shape: bf16[2,4,8,32], index: 6, kind: input, shape index: {}]
  %s7 = inlined_call_operand.vmem [shape: f32[2,1,32], index: 7, kind: input, shape index: {}]
  %s8 = inlined_call_operand.vmem [shape: f32[2,1,32], index: 8, kind: input, shape index: {}]
  %s9 = inlined_call_operand.hbm [shape: f32[2,1,32], index: 9, kind: input, shape index: {}]
  %s10 = inlined_call_operand.vmem [shape: bf16[2,32,64], index: 10, kind: input, shape index: {}]
  %s11 = inlined_call_operand.hbm [shape: f32[2,1,64], index: 11, kind: input, shape index: {}]
  %s12 = inlined_call_operand.vmem [shape: bf16[2,64,32], index: 12, kind: input, shape index: {}]
  %s13 = inlined_call_operand.vmem [shape: f32[2,1,32], index: 13, kind: input, shape index: {}]
  %s14 = inlined_call_operand.vmem [shape: f32[2,1,32], index: 14, kind: input, shape index: {}]
  %s15 = inlined_call_operand.vmem [shape: f32[2,1,32], index: 15, kind: input, shape index: {}]
  %s16 = inlined_call_operand.vmem [shape: bf16[32,128], index: 16, kind: input, shape index: {}]
  %s17 = inlined_call_operand.vmem [shape: f32[1,128], index: 17, kind: input, shape index: {}]
  %s18 = inlined_call_operand.hbm [shape: f32[2,8,128], index: 18, kind: output, shape index: {}]
  %s19 = sld [smem:[#allocation0]]
  $region120: #{tpu_custom_call.1} parent=0
    _
  %s21 = ssub.s32 1, %s19
  %s22 = scalar_select 0, %s21, %s19
  $region1: #{tpu_custom_call.1} parent=0
    #allocation2 [shape = 'u8[1024]{0}', space=vmem, size = 0x400, scoped, tag = 'input window, operand 9, single buffered']
    #allocation3 [shape = 's32[2]{0}', space=sflag, size = 0x8, scoped, tag = 'scoped memory for tpu_custom_call.1']
    #allocation4 [shape = 's32[2]{0}', space=sflag, size = 0x8, scoped, tag = 'scoped memory for tpu_custom_call.1']
    #allocation5 [shape = 'u8[1024]{0}', space=vmem, size = 0x400, scoped, tag = 'input window, operand 11, single buffered']
    #allocation6 [shape = 's32[1]{0}', space=sflag, size = 0x4, scoped, tag = 'scoped memory for tpu_custom_call.1']
    #allocation7 [shape = 'u8[8192]{0}', space=vmem, size = 0x2000, scoped, tag = 'output window, operand 0']
    %23 = vsyncpa [#allocation3], 0
    %24 = vsyncpa [#allocation6], 0
    %25 = vsyncpa [#allocation4], 0
    %s26 = scalar_lea.sflag [#allocation4], 1
    %27 = vsyncpa %s26, 0
    loop: start=0, step=1, limit=4
    $region2: #{tpu_custom_call.1} parent=1 // loop_pre_header
      _
    $region3: #{tpu_custom_call.1} parent=1 // loop_header
      %s29 = sphi 0, %s33
      %p30 = scmp.ge.s32.totalorder %s29, 4
      %s39 = sphi 0, %s41
      %s42 = sphi 0, %s39
      %s43 = sphi 0, %s42
      %s59 = sphi 0, %s43
      %s63 = sphi 0, %s63
      %s65 = sphi 0, %s63
      %s66 = sphi 0, %s65
      %s80 = sphi 0, %s66
      %s84 = sphi 0, %s84
      %s86 = sphi 0, %s84
      %s87 = sphi 0, %s86
      %s101 = sphi 0, %s87
      %s105 = sphi 0, %s105
      %s107 = sphi 0, %s105
      %s108 = sphi 0, %s107
      %s122 = sphi 0, %s108
      %s126 = sphi 0, %s126
      %s128 = sphi 0, %s126
      %s129 = sphi 0, %s128
      %s143 = sphi 0, %s129
      %s147 = sphi 0, %s147
      %s149 = sphi 0, %s147
      %s150 = sphi 0, %s149
      %s164 = sphi 0, %s150
      %s168 = sphi 0, %s168
      %s170 = sphi 0, %s168
      %s171 = sphi 0, %s170
      %s185 = sphi 0, %s171
      %s189 = sphi 0, %s189
      %s191 = sphi 0, %s189
      %s192 = sphi 0, %s191
      %s206 = sphi 0, %s192
      %s210 = sphi 0, %s210
      %s212 = sphi 0, %s210
      %s213 = sphi 0, %s212
      %s227 = sphi 0, %s213
      %s231 = sphi 0, %s231
      %s233 = sphi 0, %s231
      %s234 = sphi 0, %s233
      %s248 = sphi 0, %s234
      %s252 = sphi 0, %s252
      %s254 = sphi 0, %s252
      %s255 = sphi 0, %s254
      %s269 = sphi 0, %s255
      %s273 = sphi 0, %s273
      %s275 = sphi 0, %s273
      %s276 = sphi 0, %s275
      %s290 = sphi 0, %s276
      %s294 = sphi 0, %s294
      %s296 = sphi 0, %s294
      %s297 = sphi 0, %s296
      %s311 = sphi 0, %s297
      %s315 = sphi 0, %s315
      %s317 = sphi 0, %s315
      %s318 = sphi 0, %s317
      %s332 = sphi 0, %s318
      %s336 = sphi 0, %s336
      %s338 = sphi 0, %s336
      %s339 = sphi 0, %s338
      %s353 = sphi 0, %s339
      %s357 = sphi 0, %s357
      %s359 = sphi 0, %s357
      %s360 = sphi 0, %s359
      %s374 = sphi 0, %s360
      %s378 = sphi 0, %s378
      %s380 = sphi 0, %s378
      %s381 = sphi 0, %s380
      %s395 = sphi 0, %s381
      %s399 = sphi 0, %s399
      %s401 = sphi 0, %s399
      %s402 = sphi 0, %s401
      %s416 = sphi 0, %s402
      %s422 = sphi 0, %s424
      %s425 = sphi 0, %s422
      %s426 = sphi 0, %s425
      %s442 = sphi 0, %s426
    $region4: #{tpu_custom_call.1} parent=1 // loop_header_branch
      %32 = sbr.rel (%p30) target = $region8
    $region5: #{tpu_custom_call.1} parent=1 // loop_body
      %s34 = ssub.s32 %s29, 1
      %s35 = ssub.s32 %s29, 2
      %s36 = sadd.s32 %s29, 1
      %s37 = ssub.s32 %s29, %s36
      %p38 = scmp.eq.s32.totalorder %s37, 0
      %s40 = sadd.s32 %s39, 1
      %s41 = scalar_select %p38, %s39, %s40
      %p44 = pneg %p38
      %p45 = scmp.eq.s32.totalorder %s29, 1
      %p46 = por %p44, %p45
      %p47 = scmp.ne.s32.totalorder %s39, %s42
      %p48 = scmp.eq.s32.totalorder %s29, 0
      %p49 = por %p47, %p48
      %p50 = scmp.ne.s32.totalorder %s39, %s42
      %p51 = scmp.eq.s32.totalorder %s34, 1
      %p52 = por %p50, %p51
      %p53 = scmp.ne.s32.totalorder %s42, %s43
      %p54 = scmp.eq.s32.totalorder %s34, 0
      %p55 = por %p53, %p54
      %p56 = scmp.ne.s32.totalorder %s42, %s43
      %p57 = scmp.eq.s32.totalorder %s35, 1
      %p58 = por %p56, %p57
      %p60 = scmp.ne.s32.totalorder %s43, %s59
      %p61 = scmp.eq.s32.totalorder %s35, 0
      %p62 = por %p60, %p61
      %s64 = sadd.s32 %s63, 1
      %p67 = scmp.eq.s32.totalorder %s29, 1
      %p68 = scmp.ne.s32.totalorder %s63, %s65
      %p69 = scmp.eq.s32.totalorder %s29, 0
      %p70 = por %p68, %p69
      %p71 = scmp.ne.s32.totalorder %s63, %s65
      %p72 = scmp.eq.s32.totalorder %s34, 1
      %p73 = por %p71, %p72
      %p74 = scmp.ne.s32.totalorder %s65, %s66
      %p75 = scmp.eq.s32.totalorder %s34, 0
      %p76 = por %p74, %p75
      %p77 = scmp.ne.s32.totalorder %s65, %s66
      %p78 = scmp.eq.s32.totalorder %s35, 1
      %p79 = por %p77, %p78
      %p81 = scmp.ne.s32.totalorder %s66, %s80
      %p82 = scmp.eq.s32.totalorder %s35, 0
      %p83 = por %p81, %p82
      %s85 = sadd.s32 %s84, 1
      %p88 = scmp.eq.s32.totalorder %s29, 1
      %p89 = scmp.ne.s32.totalorder %s84, %s86
      %p90 = scmp.eq.s32.totalorder %s29, 0
      %p91 = por %p89, %p90
      %p92 = scmp.ne.s32.totalorder %s84, %s86
      %p93 = scmp.eq.s32.totalorder %s34, 1
      %p94 = por %p92, %p93
      %p95 = scmp.ne.s32.totalorder %s86, %s87
      %p96 = scmp.eq.s32.totalorder %s34, 0
      %p97 = por %p95, %p96
      %p98 = scmp.ne.s32.totalorder %s86, %s87
      %p99 = scmp.eq.s32.totalorder %s35, 1
      %p100 = por %p98, %p99
      %p102 = scmp.ne.s32.totalorder %s87, %s101
      %p103 = scmp.eq.s32.totalorder %s35, 0
      %p104 = por %p102, %p103
      %s106 = sadd.s32 %s105, 1
      %p109 = scmp.eq.s32.totalorder %s29, 1
      %p110 = scmp.ne.s32.totalorder %s105, %s107
      %p111 = scmp.eq.s32.totalorder %s29, 0
      %p112 = por %p110, %p111
      %p113 = scmp.ne.s32.totalorder %s105, %s107
      %p114 = scmp.eq.s32.totalorder %s34, 1
      %p115 = por %p113, %p114
      %p116 = scmp.ne.s32.totalorder %s107, %s108
      %p117 = scmp.eq.s32.totalorder %s34, 0
      %p118 = por %p116, %p117
      %p119 = scmp.ne.s32.totalorder %s107, %s108
      %p120 = scmp.eq.s32.totalorder %s35, 1
      %p121 = por %p119, %p120
      %p123 = scmp.ne.s32.totalorder %s108, %s122
      %p124 = scmp.eq.s32.totalorder %s35, 0
      %p125 = por %p123, %p124
      %s127 = sadd.s32 %s126, 1
      %p130 = scmp.eq.s32.totalorder %s29, 1
      %p131 = scmp.ne.s32.totalorder %s126, %s128
      %p132 = scmp.eq.s32.totalorder %s29, 0
      %p133 = por %p131, %p132
      %p134 = scmp.ne.s32.totalorder %s126, %s128
      %p135 = scmp.eq.s32.totalorder %s34, 1
      %p136 = por %p134, %p135
      %p137 = scmp.ne.s32.totalorder %s128, %s129
      %p138 = scmp.eq.s32.totalorder %s34, 0
      %p139 = por %p137, %p138
      %p140 = scmp.ne.s32.totalorder %s128, %s129
      %p141 = scmp.eq.s32.totalorder %s35, 1
      %p142 = por %p140, %p141
      %p144 = scmp.ne.s32.totalorder %s129, %s143
      %p145 = scmp.eq.s32.totalorder %s35, 0
      %p146 = por %p144, %p145
      %s148 = sadd.s32 %s147, 1
      %p151 = scmp.eq.s32.totalorder %s29, 1
      %p152 = scmp.ne.s32.totalorder %s147, %s149
      %p153 = scmp.eq.s32.totalorder %s29, 0
      %p154 = por %p152, %p153
      %p155 = scmp.ne.s32.totalorder %s147, %s149
      %p156 = scmp.eq.s32.totalorder %s34, 1
      %p157 = por %p155, %p156
      %p158 = scmp.ne.s32.totalorder %s149, %s150
      %p159 = scmp.eq.s32.totalorder %s34, 0
      %p160 = por %p158, %p159
      %p161 = scmp.ne.s32.totalorder %s149, %s150
      %p162 = scmp.eq.s32.totalorder %s35, 1
      %p163 = por %p161, %p162
      %p165 = scmp.ne.s32.totalorder %s150, %s164
      %p166 = scmp.eq.s32.totalorder %s35, 0
      %p167 = por %p165, %p166
      %s169 = sadd.s32 %s168, 1
      %p172 = scmp.eq.s32.totalorder %s29, 1
      %p173 = scmp.ne.s32.totalorder %s168, %s170
      %p174 = scmp.eq.s32.totalorder %s29, 0
      %p175 = por %p173, %p174
      %p176 = scmp.ne.s32.totalorder %s168, %s170
      %p177 = scmp.eq.s32.totalorder %s34, 1
      %p178 = por %p176, %p177
      %p179 = scmp.ne.s32.totalorder %s170, %s171
      %p180 = scmp.eq.s32.totalorder %s34, 0
      %p181 = por %p179, %p180
      %p182 = scmp.ne.s32.totalorder %s170, %s171
      %p183 = scmp.eq.s32.totalorder %s35, 1
      %p184 = por %p182, %p183
      %p186 = scmp.ne.s32.totalorder %s171, %s185
      %p187 = scmp.eq.s32.totalorder %s35, 0
      %p188 = por %p186, %p187
      %s190 = sadd.s32 %s189, 1
      %p193 = scmp.eq.s32.totalorder %s29, 1
      %p194 = scmp.ne.s32.totalorder %s189, %s191
      %p195 = scmp.eq.s32.totalorder %s29, 0
      %p196 = por %p194, %p195
      %p197 = scmp.ne.s32.totalorder %s189, %s191
      %p198 = scmp.eq.s32.totalorder %s34, 1
      %p199 = por %p197, %p198
      %p200 = scmp.ne.s32.totalorder %s191, %s192
      %p201 = scmp.eq.s32.totalorder %s34, 0
      %p202 = por %p200, %p201
      %p203 = scmp.ne.s32.totalorder %s191, %s192
      %p204 = scmp.eq.s32.totalorder %s35, 1
      %p205 = por %p203, %p204
      %p207 = scmp.ne.s32.totalorder %s192, %s206
      %p208 = scmp.eq.s32.totalorder %s35, 0
      %p209 = por %p207, %p208
      %s211 = sadd.s32 %s210, 1
      %p214 = scmp.eq.s32.totalorder %s29, 1
      %p215 = scmp.ne.s32.totalorder %s210, %s212
      %p216 = scmp.eq.s32.totalorder %s29, 0
      %p217 = por %p215, %p216
      %p218 = scmp.ne.s32.totalorder %s210, %s212
      %p219 = scmp.eq.s32.totalorder %s34, 1
      %p220 = por %p218, %p219
      %p221 = scmp.ne.s32.totalorder %s212, %s213
      %p222 = scmp.eq.s32.totalorder %s34, 0
      %p223 = por %p221, %p222
      %p224 = scmp.ne.s32.totalorder %s212, %s213
      %p225 = scmp.eq.s32.totalorder %s35, 1
      %p226 = por %p224, %p225
      %p228 = scmp.ne.s32.totalorder %s213, %s227
      %p229 = scmp.eq.s32.totalorder %s35, 0
      %p230 = por %p228, %p229
      %s232 = sadd.s32 %s231, 1
      %p235 = scmp.eq.s32.totalorder %s29, 1
      %p236 = scmp.ne.s32.totalorder %s231, %s233
      %p237 = scmp.eq.s32.totalorder %s29, 0
      %p238 = por %p236, %p237
      %p239 = scmp.ne.s32.totalorder %s231, %s233
      %p240 = scmp.eq.s32.totalorder %s34, 1
      %p241 = por %p239, %p240
      %p242 = scmp.ne.s32.totalorder %s233, %s234
      %p243 = scmp.eq.s32.totalorder %s34, 0
      %p244 = por %p242, %p243
      %p245 = scmp.ne.s32.totalorder %s233, %s234
      %p246 = scmp.eq.s32.totalorder %s35, 1
      %p247 = por %p245, %p246
      %p249 = scmp.ne.s32.totalorder %s234, %s248
      %p250 = scmp.eq.s32.totalorder %s35, 0
      %p251 = por %p249, %p250
      %s253 = sadd.s32 %s252, 1
      %p256 = scmp.eq.s32.totalorder %s29, 1
      %p257 = scmp.ne.s32.totalorder %s252, %s254
      %p258 = scmp.eq.s32.totalorder %s29, 0
      %p259 = por %p257, %p258
      %p260 = scmp.ne.s32.totalorder %s252, %s254
      %p261 = scmp.eq.s32.totalorder %s34, 1
      %p262 = por %p260, %p261
      %p263 = scmp.ne.s32.totalorder %s254, %s255
      %p264 = scmp.eq.s32.totalorder %s34, 0
      %p265 = por %p263, %p264
      %p266 = scmp.ne.s32.totalorder %s254, %s255
      %p267 = scmp.eq.s32.totalorder %s35, 1
      %p268 = por %p266, %p267
      %p270 = scmp.ne.s32.totalorder %s255, %s269
      %p271 = scmp.eq.s32.totalorder %s35, 0
      %p272 = por %p270, %p271
      %s274 = sadd.s32 %s273, 1
      %p277 = scmp.eq.s32.totalorder %s29, 1
      %p278 = scmp.ne.s32.totalorder %s273, %s275
      %p279 = scmp.eq.s32.totalorder %s29, 0
      %p280 = por %p278, %p279
      %p281 = scmp.ne.s32.totalorder %s273, %s275
      %p282 = scmp.eq.s32.totalorder %s34, 1
      %p283 = por %p281, %p282
      %p284 = scmp.ne.s32.totalorder %s275, %s276
      %p285 = scmp.eq.s32.totalorder %s34, 0
      %p286 = por %p284, %p285
      %p287 = scmp.ne.s32.totalorder %s275, %s276
      %p288 = scmp.eq.s32.totalorder %s35, 1
      %p289 = por %p287, %p288
      %p291 = scmp.ne.s32.totalorder %s276, %s290
      %p292 = scmp.eq.s32.totalorder %s35, 0
      %p293 = por %p291, %p292
      %s295 = sadd.s32 %s294, 1
      %p298 = scmp.eq.s32.totalorder %s29, 1
      %p299 = scmp.ne.s32.totalorder %s294, %s296
      %p300 = scmp.eq.s32.totalorder %s29, 0
      %p301 = por %p299, %p300
      %p302 = scmp.ne.s32.totalorder %s294, %s296
      %p303 = scmp.eq.s32.totalorder %s34, 1
      %p304 = por %p302, %p303
      %p305 = scmp.ne.s32.totalorder %s296, %s297
      %p306 = scmp.eq.s32.totalorder %s34, 0
      %p307 = por %p305, %p306
      %p308 = scmp.ne.s32.totalorder %s296, %s297
      %p309 = scmp.eq.s32.totalorder %s35, 1
      %p310 = por %p308, %p309
      %p312 = scmp.ne.s32.totalorder %s297, %s311
      %p313 = scmp.eq.s32.totalorder %s35, 0
      %p314 = por %p312, %p313
      %s316 = sadd.s32 %s315, 1
      %p319 = scmp.eq.s32.totalorder %s29, 1
      %p320 = scmp.ne.s32.totalorder %s315, %s317
      %p321 = scmp.eq.s32.totalorder %s29, 0
      %p322 = por %p320, %p321
      %p323 = scmp.ne.s32.totalorder %s315, %s317
      %p324 = scmp.eq.s32.totalorder %s34, 1
      %p325 = por %p323, %p324
      %p326 = scmp.ne.s32.totalorder %s317, %s318
      %p327 = scmp.eq.s32.totalorder %s34, 0
      %p328 = por %p326, %p327
      %p329 = scmp.ne.s32.totalorder %s317, %s318
      %p330 = scmp.eq.s32.totalorder %s35, 1
      %p331 = por %p329, %p330
      %p333 = scmp.ne.s32.totalorder %s318, %s332
      %p334 = scmp.eq.s32.totalorder %s35, 0
      %p335 = por %p333, %p334
      %s337 = sadd.s32 %s336, 1
      %p340 = scmp.eq.s32.totalorder %s29, 1
      %p341 = scmp.ne.s32.totalorder %s336, %s338
      %p342 = scmp.eq.s32.totalorder %s29, 0
      %p343 = por %p341, %p342
      %p344 = scmp.ne.s32.totalorder %s336, %s338
      %p345 = scmp.eq.s32.totalorder %s34, 1
      %p346 = por %p344, %p345
      %p347 = scmp.ne.s32.totalorder %s338, %s339
      %p348 = scmp.eq.s32.totalorder %s34, 0
      %p349 = por %p347, %p348
      %p350 = scmp.ne.s32.totalorder %s338, %s339
      %p351 = scmp.eq.s32.totalorder %s35, 1
      %p352 = por %p350, %p351
      %p354 = scmp.ne.s32.totalorder %s339, %s353
      %p355 = scmp.eq.s32.totalorder %s35, 0
      %p356 = por %p354, %p355
      %s358 = sadd.s32 %s357, 1
      %p361 = scmp.eq.s32.totalorder %s29, 1
      %p362 = scmp.ne.s32.totalorder %s357, %s359
      %p363 = scmp.eq.s32.totalorder %s29, 0
      %p364 = por %p362, %p363
      %p365 = scmp.ne.s32.totalorder %s357, %s359
      %p366 = scmp.eq.s32.totalorder %s34, 1
      %p367 = por %p365, %p366
      %p368 = scmp.ne.s32.totalorder %s359, %s360
      %p369 = scmp.eq.s32.totalorder %s34, 0
      %p370 = por %p368, %p369
      %p371 = scmp.ne.s32.totalorder %s359, %s360
      %p372 = scmp.eq.s32.totalorder %s35, 1
      %p373 = por %p371, %p372
      %p375 = scmp.ne.s32.totalorder %s360, %s374
      %p376 = scmp.eq.s32.totalorder %s35, 0
      %p377 = por %p375, %p376
      %s379 = sadd.s32 %s378, 1
      %p382 = scmp.eq.s32.totalorder %s29, 1
      %p383 = scmp.ne.s32.totalorder %s378, %s380
      %p384 = scmp.eq.s32.totalorder %s29, 0
      %p385 = por %p383, %p384
      %p386 = scmp.ne.s32.totalorder %s378, %s380
      %p387 = scmp.eq.s32.totalorder %s34, 1
      %p388 = por %p386, %p387
      %p389 = scmp.ne.s32.totalorder %s380, %s381
      %p390 = scmp.eq.s32.totalorder %s34, 0
      %p391 = por %p389, %p390
      %p392 = scmp.ne.s32.totalorder %s380, %s381
      %p393 = scmp.eq.s32.totalorder %s35, 1
      %p394 = por %p392, %p393
      %p396 = scmp.ne.s32.totalorder %s381, %s395
      %p397 = scmp.eq.s32.totalorder %s35, 0
      %p398 = por %p396, %p397
      %s400 = sadd.s32 %s399, 1
      %p403 = scmp.eq.s32.totalorder %s29, 1
      %p404 = scmp.ne.s32.totalorder %s399, %s401
      %p405 = scmp.eq.s32.totalorder %s29, 0
      %p406 = por %p404, %p405
      %p407 = scmp.ne.s32.totalorder %s399, %s401
      %p408 = scmp.eq.s32.totalorder %s34, 1
      %p409 = por %p407, %p408
      %p410 = scmp.ne.s32.totalorder %s401, %s402
      %p411 = scmp.eq.s32.totalorder %s34, 0
      %p412 = por %p410, %p411
      %p413 = scmp.ne.s32.totalorder %s401, %s402
      %p414 = scmp.eq.s32.totalorder %s35, 1
      %p415 = por %p413, %p414
      %p417 = scmp.ne.s32.totalorder %s402, %s416
      %p418 = scmp.eq.s32.totalorder %s35, 0
      %p419 = por %p417, %p418
      %s420 = ssub.s32 %s29, %s36
      %p421 = scmp.eq.s32.totalorder %s420, 0
      %s423 = sadd.s32 %s422, 1
      %s424 = scalar_select %p421, %s422, %s423
      %p427 = pneg %p421
      %p428 = scmp.eq.s32.totalorder %s29, 1
      %p429 = por %p427, %p428
      %p430 = scmp.ne.s32.totalorder %s422, %s425
      %p431 = scmp.eq.s32.totalorder %s29, 0
      %p432 = por %p430, %p431
      %p433 = scmp.ne.s32.totalorder %s422, %s425
      %p434 = scmp.eq.s32.totalorder %s34, 1
      %p435 = por %p433, %p434
      %p436 = scmp.ne.s32.totalorder %s425, %s426
      %p437 = scmp.eq.s32.totalorder %s34, 0
      %p438 = por %p436, %p437
      %p439 = scmp.ne.s32.totalorder %s425, %s426
      %p440 = scmp.eq.s32.totalorder %s35, 1
      %p441 = por %p439, %p440
      %p443 = scmp.ne.s32.totalorder %s426, %s442
      %p444 = scmp.eq.s32.totalorder %s35, 0
      %p445 = por %p443, %p444
      %p446 = scmp.le.s32.totalorder 1, %s29
      %p447 = scmp.lt.s32.totalorder %s29, 3
      %p448 = pnand %p446, %p447
      %p449 = pneg %p448
      // Predicated region
      $region9: #{tpu_custom_call.1} parent=5 // pred_check
        _
      $region10: #{tpu_custom_call.1} parent=5 // pred_check_branch
        %451 = sbr.rel (%p448) target = $region12
      $region11: #{tpu_custom_call.1} parent=5 // pred_region
        %s452 = ssub.s32 %s29, 1
        // Predicated region
        $region13: #{tpu_custom_call.1} parent=11 // pred_check
          %p453 = pneg %p76
        $region14: #{tpu_custom_call.1} parent=11 // pred_check_branch
          %455 = sbr.rel (%p453) target = $region16
        $region15: #{tpu_custom_call.1} parent=11 // pred_region
          _
        $region16: #{tpu_custom_call.1} parent=11 // pred_fallthru
          _
        // Predicated region
        $region17: #{tpu_custom_call.1} parent=11 // pred_check
          %p456 = pneg %p97
        $region18: #{tpu_custom_call.1} parent=11 // pred_check_branch
          %458 = sbr.rel (%p456) target = $region20
        $region19: #{tpu_custom_call.1} parent=11 // pred_region
          _
        $region20: #{tpu_custom_call.1} parent=11 // pred_fallthru
          _
        // Predicated region
        $region21: #{tpu_custom_call.1} parent=11 // pred_check
          %p459 = pneg %p118
        $region22: #{tpu_custom_call.1} parent=11 // pred_check_branch
          %461 = sbr.rel (%p459) target = $region24
        $region23: #{tpu_custom_call.1} parent=11 // pred_region
          _
        $region24: #{tpu_custom_call.1} parent=11 // pred_fallthru
          _
        // Predicated region
        $region25: #{tpu_custom_call.1} parent=11 // pred_check
          %p462 = pneg %p139
        $region26: #{tpu_custom_call.1} parent=11 // pred_check_branch
          %464 = sbr.rel (%p462) target = $region28
        $region27: #{tpu_custom_call.1} parent=11 // pred_region
          _
        $region28: #{tpu_custom_call.1} parent=11 // pred_fallthru
          _
        // Predicated region
        $region29: #{tpu_custom_call.1} parent=11 // pred_check
          %p465 = pneg %p160
        $region30: #{tpu_custom_call.1} parent=11 // pred_check_branch
          %467 = sbr.rel (%p465) target = $region32
        $region31: #{tpu_custom_call.1} parent=11 // pred_region
          _
        $region32: #{tpu_custom_call.1} parent=11 // pred_fallthru
          _
        // Predicated region
        $region33: #{tpu_custom_call.1} parent=11 // pred_check
          %p468 = pneg %p181
        $region34: #{tpu_custom_call.1} parent=11 // pred_check_branch
          %470 = sbr.rel (%p468) target = $region36
        $region35: #{tpu_custom_call.1} parent=11 // pred_region
          _
        $region36: #{tpu_custom_call.1} parent=11 // pred_fallthru
          _
        // Predicated region
        $region37: #{tpu_custom_call.1} parent=11 // pred_check
          %p471 = pneg %p202
        $region38: #{tpu_custom_call.1} parent=11 // pred_check_branch
          %473 = sbr.rel (%p471) target = $region40
        $region39: #{tpu_custom_call.1} parent=11 // pred_region
          _
        $region40: #{tpu_custom_call.1} parent=11 // pred_fallthru
          _
        // Predicated region
        $region41: #{tpu_custom_call.1} parent=11 // pred_check
          %p474 = pneg %p223
        $region42: #{tpu_custom_call.1} parent=11 // pred_check_branch
          %476 = sbr.rel (%p474) target = $region44
        $region43: #{tpu_custom_call.1} parent=11 // pred_region
          _
        $region44: #{tpu_custom_call.1} parent=11 // pred_fallthru
          _
        // Predicated region
        $region45: #{tpu_custom_call.1} parent=11 // pred_check
          %p477 = pneg %p244
        $region46: #{tpu_custom_call.1} parent=11 // pred_check_branch
          %479 = sbr.rel (%p477) target = $region48
        $region47: #{tpu_custom_call.1} parent=11 // pred_region
          %s481 = ssub.s32 32, 32
          %482 = vsyncadd [#allocation3], %s481
          %s483 = sshll.u32 [#allocation2], 4
          %s484 = int_to_ptr.vmem [resolvable:$true] %s483
          %489 = dma.hbm_to_vmem [thread:$0]  %s9, 32, %s484, [#allocation3], 16, 16, 1
        $region48: #{tpu_custom_call.1} parent=11 // pred_fallthru
          _
        // Predicated region
        $region49: #{tpu_custom_call.1} parent=11 // pred_check
          %p490 = pneg %p265
        $region50: #{tpu_custom_call.1} parent=11 // pred_check_branch
          %492 = sbr.rel (%p490) target = $region52
        $region51: #{tpu_custom_call.1} parent=11 // pred_region
          _
        $region52: #{tpu_custom_call.1} parent=11 // pred_fallthru
          _
        // Predicated region
        $region53: #{tpu_custom_call.1} parent=11 // pred_check
          %p493 = pneg %p286
        $region54: #{tpu_custom_call.1} parent=11 // pred_check_branch
          %495 = sbr.rel (%p493) target = $region56
        $region55: #{tpu_custom_call.1} parent=11 // pred_region
          %s497 = ssub.s32 32, 32
          %498 = vsyncadd [#allocation6], %s497
          %s499 = sshll.u32 [#allocation5], 4
          %s500 = int_to_ptr.vmem [resolvable:$true] %s499
          %505 = dma.hbm_to_vmem [thread:$0]  %s11, 32, %s500, [#allocation6], 16, 16, 1
        $region56: #{tpu_custom_call.1} parent=11 // pred_fallthru
          _
        // Predicated region
        $region57: #{tpu_custom_call.1} parent=11 // pred_check
          %p506 = pneg %p307
        $region58: #{tpu_custom_call.1} parent=11 // pred_check_branch
          %508 = sbr.rel (%p506) target = $region60
        $region59: #{tpu_custom_call.1} parent=11 // pred_region
          _
        $region60: #{tpu_custom_call.1} parent=11 // pred_fallthru
          _
        // Predicated region
        $region61: #{tpu_custom_call.1} parent=11 // pred_check
          %p509 = pneg %p328
        $region62: #{tpu_custom_call.1} parent=11 // pred_check_branch
          %511 = sbr.rel (%p509) target = $region64
        $region63: #{tpu_custom_call.1} parent=11 // pred_region
          _
        $region64: #{tpu_custom_call.1} parent=11 // pred_fallthru
          _
        // Predicated region
        $region65: #{tpu_custom_call.1} parent=11 // pred_check
          %p512 = pneg %p349
        $region66: #{tpu_custom_call.1} parent=11 // pred_check_branch
          %514 = sbr.rel (%p512) target = $region68
        $region67: #{tpu_custom_call.1} parent=11 // pred_region
          _
        $region68: #{tpu_custom_call.1} parent=11 // pred_fallthru
          _
        // Predicated region
        $region69: #{tpu_custom_call.1} parent=11 // pred_check
          %p515 = pneg %p370
        $region70: #{tpu_custom_call.1} parent=11 // pred_check_branch
          %517 = sbr.rel (%p515) target = $region72
        $region71: #{tpu_custom_call.1} parent=11 // pred_region
          _
        $region72: #{tpu_custom_call.1} parent=11 // pred_fallthru
          _
        // Predicated region
        $region73: #{tpu_custom_call.1} parent=11 // pred_check
          %p518 = pneg %p391
        $region74: #{tpu_custom_call.1} parent=11 // pred_check_branch
          %520 = sbr.rel (%p518) target = $region76
        $region75: #{tpu_custom_call.1} parent=11 // pred_region
          _
        $region76: #{tpu_custom_call.1} parent=11 // pred_fallthru
          _
        // Predicated region
        $region77: #{tpu_custom_call.1} parent=11 // pred_check
          %p521 = pneg %p412
        $region78: #{tpu_custom_call.1} parent=11 // pred_check_branch
          %523 = sbr.rel (%p521) target = $region80
        $region79: #{tpu_custom_call.1} parent=11 // pred_region
          _
        $region80: #{tpu_custom_call.1} parent=11 // pred_fallthru
          _
      $region12: #{tpu_custom_call.1} parent=5 // pred_fallthru
        _
      %p524 = scmp.lt.s32.totalorder %s29, 2
      // Predicated region
      $region81: #{tpu_custom_call.1} parent=5 // pred_check
        %p525 = pneg %p524
      $region82: #{tpu_custom_call.1} parent=5 // pred_check_branch
        %527 = sbr.rel (%p525) target = $region84
      $region83: #{tpu_custom_call.1} parent=5 // pred_region
        // Predicated region
        $region85: #{tpu_custom_call.1} parent=83 // pred_check
          %p528 = pneg %p49
        $region86: #{tpu_custom_call.1} parent=83 // pred_check_branch
          %530 = sbr.rel (%p528) target = $region88
        $region87: #{tpu_custom_call.1} parent=83 // pred_region
          %p531 = scmp.lt.s32.totalorder %s29, 1
          %s532 = scalar_select %p531, %s29, 1
          %s533 = smul.addr %s532, 8
          %s534 = scalar_lea.vmem %s0, %s533
        $region88: #{tpu_custom_call.1} parent=83 // pred_fallthru
          _
      $region84: #{tpu_custom_call.1} parent=5 // pred_fallthru
        _
      %p535 = scmp.le.s32.totalorder 1, %s29
      %p536 = scmp.lt.s32.totalorder %s29, 3
      %p537 = pnand %p535, %p536
      %p538 = pneg %p537
      // Predicated region
      $region89: #{tpu_custom_call.1} parent=5 // pred_check
        _
      $region90: #{tpu_custom_call.1} parent=5 // pred_check_branch
        %540 = sbr.rel (%p537) target = $region92
      $region91: #{tpu_custom_call.1} parent=5 // pred_region
        %s541 = ssub.s32 %s29, 1
        // Predicated region
        $region93: #{tpu_custom_call.1} parent=91 // pred_check
          %p542 = pneg %p244
        $region94: #{tpu_custom_call.1} parent=91 // pred_check_branch
          %544 = sbr.rel (%p542) target = $region96
        $region95: #{tpu_custom_call.1} parent=91 // pred_region
          %545 = dma.done [#allocation3], 32
        $region96: #{tpu_custom_call.1} parent=91 // pred_fallthru
          _
        // Predicated region
        $region97: #{tpu_custom_call.1} parent=91 // pred_check
          %p546 = pneg %p286
        $region98: #{tpu_custom_call.1} parent=91 // pred_check_branch
          %548 = sbr.rel (%p546) target = $region100
        $region99: #{tpu_custom_call.1} parent=91 // pred_region
          %549 = dma.done [#allocation6], 32
        $region100: #{tpu_custom_call.1} parent=91 // pred_fallthru
          _
        %p550 = scmp.lt.s32.totalorder %s34, 1
        %s551 = scalar_select %p550, %s34, 1
        %s552 = smul.addr %s551, 8
        %s553 = scalar_lea.vmem %s0, %s552
        %p554 = pneg %p55
        %p555 = pneg %p52
        %p556 = pneg %p76
        %p557 = pneg %p73
        %p558 = pneg %p97
        %p559 = pneg %p94
        %p560 = pneg %p118
        %p561 = pneg %p115
        %p562 = pneg %p139
        %p563 = pneg %p136
        %p564 = pneg %p160
        %p565 = pneg %p157
        %p566 = pneg %p181
        %p567 = pneg %p178
        %p568 = pneg %p202
        %p569 = pneg %p199
        %p570 = pneg %p223
        %p571 = pneg %p220
        %p572 = pneg %p244
        %p573 = pneg %p241
        %p574 = pneg %p265
        %p575 = pneg %p262
        %p576 = pneg %p286
        %p577 = pneg %p283
        %p578 = pneg %p307
        %p579 = pneg %p304
        %p580 = pneg %p328
        %p581 = pneg %p325
        %p582 = pneg %p349
        %p583 = pneg %p346
        %p584 = pneg %p370
        %p585 = pneg %p367
        %p586 = pneg %p391
        %p587 = pneg %p388
        %p588 = pneg %p412
        %p589 = pneg %p409
        %p590 = pneg %p438
        %p591 = pneg %p435
        %s592 = sand.u32 %s425, 1
        %s593 = scalar_lea.sflag [#allocation4], %s592
        %s594 = sand.u32 %s425, 1
        %s595 = smul.addr %s594, 8
        %s596 = scalar_lea.vmem [#allocation7], %s595
        %p597 = scmp.lt.s32.totalorder %s34, 1
        %s598 = scalar_select %p597, %s34, 1
        %s599 = smul.addr %s598, 8
        %s600 = scalar_lea.vmem %s0, %s599
        %v602 = vld [vmem:[%s600] sm:$0xff]
        %v603 = vpack.c.bf16 %v602, %v602
        %v604 = vld [vmem:[%s2] sm:$0x3]
        %v605 = vld [vmem:[%s3] sm:$0x1]
        %v607 = vlaneseq
        %v608 = vshrl.u32 %v607, 7
        %v609 = vsub.s32 0, %v608
        %v610 = vrot.slane %v605, %v609
        %vm612 = vcmask 31744
        %v614 = vsel %vm612, %v603, 0
        %vm616 = vcmask 1041408
        %v618 = vsel %vm616, %v604, 0
        %620 = vmatprep.subr.bf16.mxu0 0
        %621 = vmatpush1.bf16.msra.mxu0 %v618
        %622 = vmatprep.subr.bf16.mxu0 0
        %623 = vmatpush1.bf16.msra.mxu0 0
        %624 = vmatprep.subr.bf16.mxu0 0
        %625 = vmatpush1.bf16.msra.mxu0 0
        %626 = vmatprep.subr.bf16.mxu0 0
        %627 = vmatpush1.bf16.msra.mxu0 0
        %628 = vmatprep.subr.bf16.mxu0 0
        %629 = vmatpush1.bf16.msra.mxu0 0
        %630 = vmatprep.subr.bf16.mxu0 0
        %631 = vmatpush1.bf16.msra.mxu0 0
        %632 = vmatprep.subr.bf16.mxu0 0
        %633 = vmatpush1.bf16.msra.mxu0 0
        %634 = vmatprep.subr.bf16.mxu0 0
        %635 = vmatpush1.bf16.msra.mxu0 0
        %636 = vmatprep.subr.bf16.mxu0 0
        %637 = vmatpush1.bf16.msra.mxu0 0
        %638 = vmatprep.subr.bf16.mxu0 0
        %639 = vmatpush1.bf16.msra.mxu0 0
        %640 = vmatprep.subr.bf16.mxu0 0
        %641 = vmatpush1.bf16.msra.mxu0 0
        %642 = vmatprep.subr.bf16.mxu0 0
        %643 = vmatpush1.bf16.msra.mxu0 0
        %644 = vmatprep.subr.bf16.mxu0 0
        %645 = vmatpush1.bf16.msra.mxu0 0
        %646 = vmatprep.subr.bf16.mxu0 0
        %647 = vmatpush1.bf16.msra.mxu0 0
        %648 = vmatprep.subr.bf16.mxu0 0
        %649 = vmatpush1.bf16.msra.mxu0 0
        %650 = vmatprep.subr.bf16.mxu0 0
        %651 = vmatpush1.bf16.msra.mxu0 0
        %652 = vmatprep.mubr.bf16.mxu0 0
        %653 = vmatmul.mubr.bf16.gmra.mrb[0].mxu0 %v614
        %v654 = vpop.f32.mrb[0].mxu0
        %v655 = vadd.f32 %v610, %v654
        %v656 = vpop.f32.mrb[0].mxu0
        %v657 = vpop.f32.mrb[0].mxu0
        %v658 = vpop.f32.mrb[0].mxu0
        %659 = vdwg.mxu0
        %v660 = vmul.f32 %v655, 0.5
        %v661 = vmul.f32 %v655, 0.70710677
        %vm662 = vcmp.ge.f32.partialorder %v661, 0.0
        %v663 = vsel %vm662, 1.0, -1.0
        %v664 = vand.u32 2147483647, %v661
        %v665 = vmul.f32 %v664, 0.3275911
        %v666 = vadd.f32 %v665, 1.0
        %v667 = vrcp.pop %v666
        %v668 = vmul.f32 1.0, %v667
        %v669 = vmul.f32 %v668, 1.0614054
        %v670 = vadd.f32 %v669, -1.4531521
        %v671 = vmul.f32 %v670, %v668
        %v672 = vadd.f32 %v671, 1.4214138
        %v673 = vmul.f32 %v672, %v668
        %v674 = vadd.f32 %v673, -0.28449672
        %v675 = vmul.f32 %v674, %v668
        %v676 = vadd.f32 %v675, 0.2548296
        %v677 = vmul.f32 %v676, %v668
        %v678 = vsub.f32 0.0, %v664
        %v679 = vmul.f32 %v678, %v664
        %v680 = vmul.f32 %v679, 1.442695
        %v681 = vpow.pop %v680
        %v682 = vmul.f32 %v677, %v681
        %v683 = vsub.f32 1.0, %v682
        %v684 = vmul.f32 %v663, %v683
        %v685 = vadd.f32 %v684, 1.0
        %v686 = vmul.f32 %v660, %v685
        %v687 = vld [vmem:[%s1] sm:$0xff]
        %v688 = vadd.f32 %v686, %v687
        %v689 = vlaneseq
        %v690 = vshrl.u32 %v689, 7
        %v691 = vlaneseq
        %v692 = vand.u32 %v691, 127
        %vm693 = vcmp.le.s32.totalorder %v692, %v690
        loop: start=0, step=1, limit=2
        $region101: #{tpu_custom_call.1} parent=91 // loop_pre_header
          _
        $region102: #{tpu_custom_call.1} parent=91 // loop_header
          %s695 = sphi 0, %s699
          %p696 = scmp.ge.s32.totalorder %s695, 2
          %v700 = vphi %v688, %v1677
        $region103: #{tpu_custom_call.1} parent=91 // loop_header_branch
          %698 = sbr.rel (%p696) target = $region107
        $region104: #{tpu_custom_call.1} parent=91 // loop_body
          %v701 = vpack.c.bf16 %v700, %v700
          %s702 = smul.u32 %s695, 4
          %s703 = smul.addr %s702, 4
          %s704 = scalar_lea.vmem %s4, %s703
          %v705 = vld [vmem:[%s704] sm:$0xf]
          %v706 = vld [vmem:[%s704 + $0x4] sm:$0xf]
          %v707 = vld [vmem:[%s704 + $0x8] sm:$0xf]
          %v708 = vld [vmem:[%s704 + $0xc] sm:$0xf]
          %s709 = scalar_lea.vmem %s5, %s695
          %v710 = vld [vmem:[%s709] sm:$0x1]
          %v712 = vlaneseq
          %v713 = vshrl.u32 %v712, 7
          %v714 = vsub.s32 0, %v713
          %v715 = vrot.slane %v710, %v714
          %v721 = vunpack.c.l.b16 %v705
          %v722 = vunpack.c.l.b16 %v706
          %v723 = vunpack.c.l.b16 %v707
          %v724 = vunpack.c.l.b16 %v708
          %v725 = vpack.c.b16 %v722, %v721
          %v726 = vpack.c.b16 %v724, %v723
          %vm729 = vcmask 261120
          %v731 = vsel %vm729, %v701, 0
          %733 = vmatprep.subr.bf16.mxu0 0
          %734 = vmatpush1.bf16.msra.mxu0 %v725
          %735 = vmatprep.subr.bf16.mxu0 0
          %736 = vmatpush1.bf16.msra.mxu0 %v726
          %737 = vmatprep.subr.bf16.mxu0 0
          %738 = vmatpush1.bf16.msra.mxu0 0
          %739 = vmatprep.subr.bf16.mxu0 0
          %740 = vmatpush1.bf16.msra.mxu0 0
          %741 = vmatprep.subr.bf16.mxu0 0
          %742 = vmatpush1.bf16.msra.mxu0 0
          %743 = vmatprep.subr.bf16.mxu0 0
          %744 = vmatpush1.bf16.msra.mxu0 0
          %745 = vmatprep.subr.bf16.mxu0 0
          %746 = vmatpush1.bf16.msra.mxu0 0
          %747 = vmatprep.subr.bf16.mxu0 0
          %748 = vmatpush1.bf16.msra.mxu0 0
          %749 = vmatprep.subr.bf16.mxu0 0
          %750 = vmatpush1.bf16.msra.mxu0 0
          %751 = vmatprep.subr.bf16.mxu0 0
          %752 = vmatpush1.bf16.msra.mxu0 0
          %753 = vmatprep.subr.bf16.mxu0 0
          %754 = vmatpush1.bf16.msra.mxu0 0
          %755 = vmatprep.subr.bf16.mxu0 0
          %756 = vmatpush1.bf16.msra.mxu0 0
          %757 = vmatprep.subr.bf16.mxu0 0
          %758 = vmatpush1.bf16.msra.mxu0 0
          %759 = vmatprep.subr.bf16.mxu0 0
          %760 = vmatpush1.bf16.msra.mxu0 0
          %761 = vmatprep.subr.bf16.mxu0 0
          %762 = vmatpush1.bf16.msra.mxu0 0
          %763 = vmatprep.subr.bf16.mxu0 0
          %764 = vmatpush1.bf16.msra.mxu0 0
          %765 = vmatprep.mubr.bf16.mxu0 0
          %766 = vmatmul.mubr.bf16.gmra.mrb[0].mxu0 %v731
          %v767 = vpop.f32.mrb[0].mxu0
          %v768 = vadd.f32 %v715, %v767
          %v769 = vpop.f32.mrb[0].mxu0
          %v770 = vpop.f32.mrb[0].mxu0
          %v771 = vpop.f32.mrb[0].mxu0
          %772 = vdwg.mxu0
          %v773 = vpack.c.bf16 %v768, %v768
          %s774 = smul.addr %s702, 4
          %s775 = scalar_lea.vmem %s6, %s774
          %v776 = vld [vmem:[%s775] sm:$0xf]
          %v777 = vld [vmem:[%s775 + $0x4] sm:$0xf]
          %v778 = vld [vmem:[%s775 + $0x8] sm:$0xf]
          %v779 = vld [vmem:[%s775 + $0xc] sm:$0xf]
          %781 = vrot.lane.b32.xlu0 %v773, 96
          %v782 = vpop.permute.xlu0 %781
          %vm783 = vcmask 64512
          %v785 = vsel %vm783, %v773, 0
          %v788 = vsel %vm783, %v782, 0
          %790 = vmatprep.subr.bf16.mxu0 0
          %791 = vmatpush1.bf16.xpose.msra.mxu0 %v788
          %792 = vmatprep.subr.bf16.mxu0 0
          %793 = vmatpush1.bf16.xpose.msra.mxu0 0
          %794 = vmatprep.subr.bf16.mxu0 0
          %795 = vmatpush1.bf16.xpose.msra.mxu0 0
          %796 = vmatprep.subr.bf16.mxu0 0
          %797 = vmatpush1.bf16.xpose.msra.mxu0 0
          %798 = vmatprep.subr.bf16.mxu0 0
          %799 = vmatpush1.bf16.xpose.msra.mxu0 0
          %800 = vmatprep.subr.bf16.mxu0 0
          %801 = vmatpush1.bf16.xpose.msra.mxu0 0
          %802 = vmatprep.subr.bf16.mxu0 0
          %803 = vmatpush1.bf16.xpose.msra.mxu0 0
          %804 = vmatprep.subr.bf16.mxu0 0
          %805 = vmatpush1.bf16.xpose.msra.mxu0 0
          %806 = vmatprep.subr.bf16.mxu0 0
          %807 = vmatpush1.bf16.xpose.msra.mxu0 0
          %808 = vmatprep.subr.bf16.mxu0 0
          %809 = vmatpush1.bf16.xpose.msra.mxu0 0
          %810 = vmatprep.subr.bf16.mxu0 0
          %811 = vmatpush1.bf16.xpose.msra.mxu0 0
          %812 = vmatprep.subr.bf16.mxu0 0
          %813 = vmatpush1.bf16.xpose.msra.mxu0 0
          %814 = vmatprep.subr.bf16.mxu0 0
          %815 = vmatpush1.bf16.xpose.msra.mxu0 0
          %816 = vmatprep.subr.bf16.mxu0 0
          %817 = vmatpush1.bf16.xpose.msra.mxu0 0
          %818 = vmatprep.subr.bf16.mxu0 0
          %819 = vmatpush1.bf16.xpose.msra.mxu0 0
          %820 = vmatprep.subr.bf16.mxu0 0
          %821 = vmatpush1.bf16.xpose.msra.mxu0 0
          %822 = vmatprep.mubr.bf16.mxu0 0
          %823 = vmatmul.mubr.bf16.gmra.mrb[0].mxu0 %v785
          %v824 = vpop.f32.mrb[0].mxu0
          %v825 = vadd.f32 0.0, %v824
          %v826 = vpop.f32.mrb[0].mxu0
          %v827 = vpop.f32.mrb[0].mxu0
          %v828 = vpop.f32.mrb[0].mxu0
          %829 = vdwg.mxu0
          %v830 = vmul.f32 %v825, 0.35355338
          %v831 = vsel %vm693, %v830, -inf
          %v832 = vsel %vm783, %v831, -inf
          %833 = vmax.xlane.f32.xlu0 %v832
          %v834 = vpop.xlane.xlu0 %833
          %v835 = vsub.f32 %v831, %v834
          %v836 = vmul.f32 %v835, 1.442695
          %v837 = vpow.pop %v836
          %v838 = vsel %vm783, %v837, 0.0
          %839 = vadd.xlane.f32.xlu0 %v838
          %v840 = vpop.xlane.xlu0 %839
          %v841 = vrcp.pop %v840
          %v842 = vmul.f32 %v837, %v841
          %v843 = vpack.c.bf16 %v842, %v842
          %844 = vrot.lane.b32.xlu0 %v773, 64
          %v845 = vpop.permute.xlu0 %844
          %v847 = vsel %vm783, %v843, 0
          %vm849 = vcmask 1043456
          %v851 = vsel %vm849, %v845, 0
          %853 = vmatprep.subr.bf16.mxu0 0
          %854 = vmatpush1.bf16.msra.mxu0 %v851
          %855 = vmatprep.subr.bf16.mxu0 0
          %856 = vmatpush1.bf16.msra.mxu0 0
          %857 = vmatprep.subr.bf16.mxu0 0
          %858 = vmatpush1.bf16.msra.mxu0 0
          %859 = vmatprep.subr.bf16.mxu0 0
          %860 = vmatpush1.bf16.msra.mxu0 0
          %861 = vmatprep.subr.bf16.mxu0 0
          %862 = vmatpush1.bf16.msra.mxu0 0
          %863 = vmatprep.subr.bf16.mxu0 0
          %864 = vmatpush1.bf16.msra.mxu0 0
          %865 = vmatprep.subr.bf16.mxu0 0
          %866 = vmatpush1.bf16.msra.mxu0 0
          %867 = vmatprep.subr.bf16.mxu0 0
          %868 = vmatpush1.bf16.msra.mxu0 0
          %869 = vmatprep.subr.bf16.mxu0 0
          %870 = vmatpush1.bf16.msra.mxu0 0
          %871 = vmatprep.subr.bf16.mxu0 0
          %872 = vmatpush1.bf16.msra.mxu0 0
          %873 = vmatprep.subr.bf16.mxu0 0
          %874 = vmatpush1.bf16.msra.mxu0 0
          %875 = vmatprep.subr.bf16.mxu0 0
          %876 = vmatpush1.bf16.msra.mxu0 0
          %877 = vmatprep.subr.bf16.mxu0 0
          %878 = vmatpush1.bf16.msra.mxu0 0
          %879 = vmatprep.subr.bf16.mxu0 0
          %880 = vmatpush1.bf16.msra.mxu0 0
          %881 = vmatprep.subr.bf16.mxu0 0
          %882 = vmatpush1.bf16.msra.mxu0 0
          %883 = vmatprep.subr.bf16.mxu0 0
          %884 = vmatpush1.bf16.msra.mxu0 0
          %885 = vmatprep.mubr.bf16.mxu0 0
          %886 = vmatmul.mubr.bf16.gmra.mrb[0].mxu0 %v847
          %v887 = vpop.f32.mrb[0].mxu0
          %v888 = vadd.f32 0.0, %v887
          %v889 = vpop.f32.mrb[0].mxu0
          %v890 = vpop.f32.mrb[0].mxu0
          %v891 = vpop.f32.mrb[0].mxu0
          %892 = vdwg.mxu0
          %v893 = vpack.c.bf16 %v888, %v888
          %894 = vrot.lane.b32.xlu0 %v773, 120
          %v895 = vpop.permute.xlu0 %894
          %896 = vrot.lane.b32.xlu0 %v773, 88
          %v897 = vpop.permute.xlu0 %896
          %v899 = vsel %vm783, %v895, 0
          %v902 = vsel %vm783, %v897, 0
          %904 = vmatprep.subr.bf16.mxu0 0
          %905 = vmatpush1.bf16.xpose.msra.mxu0 %v902
          %906 = vmatprep.subr.bf16.mxu0 0
          %907 = vmatpush1.bf16.xpose.msra.mxu0 0
          %908 = vmatprep.subr.bf16.mxu0 0
          %909 = vmatpush1.bf16.xpose.msra.mxu0 0
          %910 = vmatprep.subr.bf16.mxu0 0
          %911 = vmatpush1.bf16.xpose.msra.mxu0 0
          %912 = vmatprep.subr.bf16.mxu0 0
          %913 = vmatpush1.bf16.xpose.msra.mxu0 0
          %914 = vmatprep.subr.bf16.mxu0 0
          %915 = vmatpush1.bf16.xpose.msra.mxu0 0
          %916 = vmatprep.subr.bf16.mxu0 0
          %917 = vmatpush1.bf16.xpose.msra.mxu0 0
          %918 = vmatprep.subr.bf16.mxu0 0
          %919 = vmatpush1.bf16.xpose.msra.mxu0 0
          %920 = vmatprep.subr.bf16.mxu0 0
          %921 = vmatpush1.bf16.xpose.msra.mxu0 0
          %922 = vmatprep.subr.bf16.mxu0 0
          %923 = vmatpush1.bf16.xpose.msra.mxu0 0
          %924 = vmatprep.subr.bf16.mxu0 0
          %925 = vmatpush1.bf16.xpose.msra.mxu0 0
          %926 = vmatprep.subr.bf16.mxu0 0
          %927 = vmatpush1.bf16.xpose.msra.mxu0 0
          %928 = vmatprep.subr.bf16.mxu0 0
          %929 = vmatpush1.bf16.xpose.msra.mxu0 0
          %930 = vmatprep.subr.bf16.mxu0 0
          %931 = vmatpush1.bf16.xpose.msra.mxu0 0
          %932 = vmatprep.subr.bf16.mxu0 0
          %933 = vmatpush1.bf16.xpose.msra.mxu0 0
          %934 = vmatprep.subr.bf16.mxu0 0
          %935 = vmatpush1.bf16.xpose.msra.mxu0 0
          %936 = vmatprep.mubr.bf16.mxu0 0
          %937 = vmatmul.mubr.bf16.gmra.mrb[0].mxu0 %v899
          %v938 = vpop.f32.mrb[0].mxu0
          %v939 = vadd.f32 0.0, %v938
          %v940 = vpop.f32.mrb[0].mxu0
          %v941 = vpop.f32.mrb[0].mxu0
          %v942 = vpop.f32.mrb[0].mxu0
          %943 = vdwg.mxu0
          %v944 = vmul.f32 %v939, 0.35355338
          %v945 = vsel %vm693, %v944, -inf
          %v946 = vsel %vm783, %v945, -inf
          %947 = vmax.xlane.f32.xlu0 %v946
          %v948 = vpop.xlane.xlu0 %947
          %v949 = vsub.f32 %v945, %v948
          %v950 = vmul.f32 %v949, 1.442695
          %v951 = vpow.pop %v950
          %v952 = vsel %vm783, %v951, 0.0
          %953 = vadd.xlane.f32.xlu0 %v952
          %v954 = vpop.xlane.xlu0 %953
          %v955 = vrcp.pop %v954
          %v956 = vmul.f32 %v951, %v955
          %v957 = vpack.c.bf16 %v956, %v956
          %958 = vrot.lane.b32.xlu0 %v773, 56
          %v959 = vpop.permute.xlu0 %958
          %v961 = vsel %vm783, %v957, 0
          %v964 = vsel %vm849, %v959, 0
          %966 = vmatprep.subr.bf16.mxu0 0
          %967 = vmatpush1.bf16.msra.mxu0 %v964
          %968 = vmatprep.subr.bf16.mxu0 0
          %969 = vmatpush1.bf16.msra.mxu0 0
          %970 = vmatprep.subr.bf16.mxu0 0
          %971 = vmatpush1.bf16.msra.mxu0 0
          %972 = vmatprep.subr.bf16.mxu0 0
          %973 = vmatpush1.bf16.msra.mxu0 0
          %974 = vmatprep.subr.bf16.mxu0 0
          %975 = vmatpush1.bf16.msra.mxu0 0
          %976 = vmatprep.subr.bf16.mxu0 0
          %977 = vmatpush1.bf16.msra.mxu0 0
          %978 = vmatprep.subr.bf16.mxu0 0
          %979 = vmatpush1.bf16.msra.mxu0 0
          %980 = vmatprep.subr.bf16.mxu0 0
          %981 = vmatpush1.bf16.msra.mxu0 0
          %982 = vmatprep.subr.bf16.mxu0 0
          %983 = vmatpush1.bf16.msra.mxu0 0
          %984 = vmatprep.subr.bf16.mxu0 0
          %985 = vmatpush1.bf16.msra.mxu0 0
          %986 = vmatprep.subr.bf16.mxu0 0
          %987 = vmatpush1.bf16.msra.mxu0 0
          %988 = vmatprep.subr.bf16.mxu0 0
          %989 = vmatpush1.bf16.msra.mxu0 0
          %990 = vmatprep.subr.bf16.mxu0 0
          %991 = vmatpush1.bf16.msra.mxu0 0
          %992 = vmatprep.subr.bf16.mxu0 0
          %993 = vmatpush1.bf16.msra.mxu0 0
          %994 = vmatprep.subr.bf16.mxu0 0
          %995 = vmatpush1.bf16.msra.mxu0 0
          %996 = vmatprep.subr.bf16.mxu0 0
          %997 = vmatpush1.bf16.msra.mxu0 0
          %998 = vmatprep.mubr.bf16.mxu0 0
          %999 = vmatmul.mubr.bf16.gmra.mrb[0].mxu0 %v961
          %v1000 = vpop.f32.mrb[0].mxu0
          %v1001 = vadd.f32 0.0, %v1000
          %v1002 = vpop.f32.mrb[0].mxu0
          %v1003 = vpop.f32.mrb[0].mxu0
          %v1004 = vpop.f32.mrb[0].mxu0
          %1005 = vdwg.mxu0
          %v1006 = vpack.c.bf16 %v1001, %v1001
          %v1008 = vsel %vm783, %v1006, 0
          %v1011 = vsel %vm849, %v777, 0
          %1013 = vmatprep.subr.bf16.mxu0 0
          %1014 = vmatpush1.bf16.msra.mxu0 %v1011
          %1015 = vmatprep.subr.bf16.mxu0 0
          %1016 = vmatpush1.bf16.msra.mxu0 0
          %1017 = vmatprep.subr.bf16.mxu0 0
          %1018 = vmatpush1.bf16.msra.mxu0 0
          %1019 = vmatprep.subr.bf16.mxu0 0
          %1020 = vmatpush1.bf16.msra.mxu0 0
          %1021 = vmatprep.subr.bf16.mxu0 0
          %1022 = vmatpush1.bf16.msra.mxu0 0
          %1023 = vmatprep.subr.bf16.mxu0 0
          %1024 = vmatpush1.bf16.msra.mxu0 0
          %1025 = vmatprep.subr.bf16.mxu0 0
          %1026 = vmatpush1.bf16.msra.mxu0 0
          %1027 = vmatprep.subr.bf16.mxu0 0
          %1028 = vmatpush1.bf16.msra.mxu0 0
          %1029 = vmatprep.subr.bf16.mxu0 0
          %1030 = vmatpush1.bf16.msra.mxu0 0
          %1031 = vmatprep.subr.bf16.mxu0 0
          %1032 = vmatpush1.bf16.msra.mxu0 0
          %1033 = vmatprep.subr.bf16.mxu0 0
          %1034 = vmatpush1.bf16.msra.mxu0 0
          %1035 = vmatprep.subr.bf16.mxu0 0
          %1036 = vmatpush1.bf16.msra.mxu0 0
          %1037 = vmatprep.subr.bf16.mxu0 0
          %1038 = vmatpush1.bf16.msra.mxu0 0
          %1039 = vmatprep.subr.bf16.mxu0 0
          %1040 = vmatpush1.bf16.msra.mxu0 0
          %1041 = vmatprep.subr.bf16.mxu0 0
          %1042 = vmatpush1.bf16.msra.mxu0 0
          %1043 = vmatprep.subr.bf16.mxu0 0
          %1044 = vmatpush1.bf16.msra.mxu0 0
          %1045 = vmatprep.mubr.bf16.mxu0 0
          %1046 = vmatmul.mubr.bf16.gmra.mrb[0].mxu0 %v1008
          %v1047 = vpop.f32.mrb[0].mxu0
          %v1048 = vadd.f32 0.0, %v1047
          %v1049 = vpop.f32.mrb[0].mxu0
          %v1050 = vpop.f32.mrb[0].mxu0
          %v1051 = vpop.f32.mrb[0].mxu0
          %1052 = vdwg.mxu0
          %v1054 = vsel %vm783, %v893, 0
          %v1057 = vsel %vm849, %v776, 0
          %1059 = vmatprep.subr.bf16.mxu0 0
          %1060 = vmatpush1.bf16.msra.mxu0 %v1057
          %1061 = vmatprep.subr.bf16.mxu0 0
          %1062 = vmatpush1.bf16.msra.mxu0 0
          %1063 = vmatprep.subr.bf16.mxu0 0
          %1064 = vmatpush1.bf16.msra.mxu0 0
          %1065 = vmatprep.subr.bf16.mxu0 0
          %1066 = vmatpush1.bf16.msra.mxu0 0
          %1067 = vmatprep.subr.bf16.mxu0 0
          %1068 = vmatpush1.bf16.msra.mxu0 0
          %1069 = vmatprep.subr.bf16.mxu0 0
          %1070 = vmatpush1.bf16.msra.mxu0 0
          %1071 = vmatprep.subr.bf16.mxu0 0
          %1072 = vmatpush1.bf16.msra.mxu0 0
          %1073 = vmatprep.subr.bf16.mxu0 0
          %1074 = vmatpush1.bf16.msra.mxu0 0
          %1075 = vmatprep.subr.bf16.mxu0 0
          %1076 = vmatpush1.bf16.msra.mxu0 0
          %1077 = vmatprep.subr.bf16.mxu0 0
          %1078 = vmatpush1.bf16.msra.mxu0 0
          %1079 = vmatprep.subr.bf16.mxu0 0
          %1080 = vmatpush1.bf16.msra.mxu0 0
          %1081 = vmatprep.subr.bf16.mxu0 0
          %1082 = vmatpush1.bf16.msra.mxu0 0
          %1083 = vmatprep.subr.bf16.mxu0 0
          %1084 = vmatpush1.bf16.msra.mxu0 0
          %1085 = vmatprep.subr.bf16.mxu0 0
          %1086 = vmatpush1.bf16.msra.mxu0 0
          %1087 = vmatprep.subr.bf16.mxu0 0
          %1088 = vmatpush1.bf16.msra.mxu0 0
          %1089 = vmatprep.subr.bf16.mxu0 0
          %1090 = vmatpush1.bf16.msra.mxu0 0
          %1091 = vmatprep.mubr.bf16.mxu0 0
          %1092 = vmatmul.mubr.bf16.gmra.mrb[0].mxu0 %v1054
          %v1093 = vpop.f32.mrb[0].mxu0
          %v1094 = vadd.f32 %v1048, %v1093
          %v1095 = vpop.f32.mrb[0].mxu0
          %v1096 = vpop.f32.mrb[0].mxu0
          %v1097 = vpop.f32.mrb[0].mxu0
          %1098 = vdwg.mxu0
          %1099 = vrot.lane.b32.xlu0 %v773, 112
          %v1100 = vpop.permute.xlu0 %1099
          %1101 = vrot.lane.b32.xlu0 %v773, 80
          %v1102 = vpop.permute.xlu0 %1101
          %v1104 = vsel %vm783, %v1100, 0
          %v1107 = vsel %vm783, %v1102, 0
          %1109 = vmatprep.subr.bf16.mxu0 0
          %1110 = vmatpush1.bf16.xpose.msra.mxu0 %v1107
          %1111 = vmatprep.subr.bf16.mxu0 0
          %1112 = vmatpush1.bf16.xpose.msra.mxu0 0
          %1113 = vmatprep.subr.bf16.mxu0 0
          %1114 = vmatpush1.bf16.xpose.msra.mxu0 0
          %1115 = vmatprep.subr.bf16.mxu0 0
          %1116 = vmatpush1.bf16.xpose.msra.mxu0 0
          %1117 = vmatprep.subr.bf16.mxu0 0
          %1118 = vmatpush1.bf16.xpose.msra.mxu0 0
          %1119 = vmatprep.subr.bf16.mxu0 0
          %1120 = vmatpush1.bf16.xpose.msra.mxu0 0
          %1121 = vmatprep.subr.bf16.mxu0 0
          %1122 = vmatpush1.bf16.xpose.msra.mxu0 0
          %1123 = vmatprep.subr.bf16.mxu0 0
          %1124 = vmatpush1.bf16.xpose.msra.mxu0 0
          %1125 = vmatprep.subr.bf16.mxu0 0
          %1126 = vmatpush1.bf16.xpose.msra.mxu0 0
          %1127 = vmatprep.subr.bf16.mxu0 0
          %1128 = vmatpush1.bf16.xpose.msra.mxu0 0
          %1129 = vmatprep.subr.bf16.mxu0 0
          %1130 = vmatpush1.bf16.xpose.msra.mxu0 0
          %1131 = vmatprep.subr.bf16.mxu0 0
          %1132 = vmatpush1.bf16.xpose.msra.mxu0 0
          %1133 = vmatprep.subr.bf16.mxu0 0
          %1134 = vmatpush1.bf16.xpose.msra.mxu0 0
          %1135 = vmatprep.subr.bf16.mxu0 0
          %1136 = vmatpush1.bf16.xpose.msra.mxu0 0
          %1137 = vmatprep.subr.bf16.mxu0 0
          %1138 = vmatpush1.bf16.xpose.msra.mxu0 0
          %1139 = vmatprep.subr.bf16.mxu0 0
          %1140 = vmatpush1.bf16.xpose.msra.mxu0 0
          %1141 = vmatprep.mubr.bf16.mxu0 0
          %1142 = vmatmul.mubr.bf16.gmra.mrb[0].mxu0 %v1104
          %v1143 = vpop.f32.mrb[0].mxu0
          %v1144 = vadd.f32 0.0, %v1143
          %v1145 = vpop.f32.mrb[0].mxu0
          %v1146 = vpop.f32.mrb[0].mxu0
          %v1147 = vpop.f32.mrb[0].mxu0
          %1148 = vdwg.mxu0
          %v1149 = vmul.f32 %v1144, 0.35355338
          %v1150 = vsel %vm693, %v1149, -inf
          %v1151 = vsel %vm783, %v1150, -inf
          %1152 = vmax.xlane.f32.xlu0 %v1151
          %v1153 = vpop.xlane.xlu0 %1152
          %v1154 = vsub.f32 %v1150, %v1153
          %v1155 = vmul.f32 %v1154, 1.442695
          %v1156 = vpow.pop %v1155
          %v1157 = vsel %vm783, %v1156, 0.0
          %1158 = vadd.xlane.f32.xlu0 %v1157
          %v1159 = vpop.xlane.xlu0 %1158
          %v1160 = vrcp.pop %v1159
          %v1161 = vmul.f32 %v1156, %v1160
          %v1162 = vpack.c.bf16 %v1161, %v1161
          %1163 = vrot.lane.b32.xlu0 %v773, 48
          %v1164 = vpop.permute.xlu0 %1163
          %v1166 = vsel %vm783, %v1162, 0
          %v1169 = vsel %vm849, %v1164, 0
          %1171 = vmatprep.subr.bf16.mxu0 0
          %1172 = vmatpush1.bf16.msra.mxu0 %v1169
          %1173 = vmatprep.subr.bf16.mxu0 0
          %1174 = vmatpush1.bf16.msra.mxu0 0
          %1175 = vmatprep.subr.bf16.mxu0 0
          %1176 = vmatpush1.bf16.msra.mxu0 0
          %1177 = vmatprep.subr.bf16.mxu0 0
          %1178 = vmatpush1.bf16.msra.mxu0 0
          %1179 = vmatprep.subr.bf16.mxu0 0
          %1180 = vmatpush1.bf16.msra.mxu0 0
          %1181 = vmatprep.subr.bf16.mxu0 0
          %1182 = vmatpush1.bf16.msra.mxu0 0
          %1183 = vmatprep.subr.bf16.mxu0 0
          %1184 = vmatpush1.bf16.msra.mxu0 0
          %1185 = vmatprep.subr.bf16.mxu0 0
          %1186 = vmatpush1.bf16.msra.mxu0 0
          %1187 = vmatprep.subr.bf16.mxu0 0
          %1188 = vmatpush1.bf16.msra.mxu0 0
          %1189 = vmatprep.subr.bf16.mxu0 0
          %1190 = vmatpush1.bf16.msra.mxu0 0
          %1191 = vmatprep.subr.bf16.mxu0 0
          %1192 = vmatpush1.bf16.msra.mxu0 0
          %1193 = vmatprep.subr.bf16.mxu0 0
          %1194 = vmatpush1.bf16.msra.mxu0 0
          %1195 = vmatprep.subr.bf16.mxu0 0
          %1196 = vmatpush1.bf16.msra.mxu0 0
          %1197 = vmatprep.subr.bf16.mxu0 0
          %1198 = vmatpush1.bf16.msra.mxu0 0
          %1199 = vmatprep.subr.bf16.mxu0 0
          %1200 = vmatpush1.bf16.msra.mxu0 0
          %1201 = vmatprep.subr.bf16.mxu0 0
          %1202 = vmatpush1.bf16.msra.mxu0 0
          %1203 = vmatprep.mubr.bf16.mxu0 0
          %1204 = vmatmul.mubr.bf16.gmra.mrb[0].mxu0 %v1166
          %v1205 = vpop.f32.mrb[0].mxu0
          %v1206 = vadd.f32 0.0, %v1205
          %v1207 = vpop.f32.mrb[0].mxu0
          %v1208 = vpop.f32.mrb[0].mxu0
          %v1209 = vpop.f32.mrb[0].mxu0
          %1210 = vdwg.mxu0
          %v1211 = vpack.c.bf16 %v1206, %v1206
          %v1213 = vsel %vm783, %v1211, 0
          %v1216 = vsel %vm849, %v778, 0
          %1218 = vmatprep.subr.bf16.mxu0 0
          %1219 = vmatpush1.bf16.msra.mxu0 %v1216
          %1220 = vmatprep.subr.bf16.mxu0 0
          %1221 = vmatpush1.bf16.msra.mxu0 0
          %1222 = vmatprep.subr.bf16.mxu0 0
          %1223 = vmatpush1.bf16.msra.mxu0 0
          %1224 = vmatprep.subr.bf16.mxu0 0
          %1225 = vmatpush1.bf16.msra.mxu0 0
          %1226 = vmatprep.subr.bf16.mxu0 0
          %1227 = vmatpush1.bf16.msra.mxu0 0
          %1228 = vmatprep.subr.bf16.mxu0 0
          %1229 = vmatpush1.bf16.msra.mxu0 0
          %1230 = vmatprep.subr.bf16.mxu0 0
          %1231 = vmatpush1.bf16.msra.mxu0 0
          %1232 = vmatprep.subr.bf16.mxu0 0
          %1233 = vmatpush1.bf16.msra.mxu0 0
          %1234 = vmatprep.subr.bf16.mxu0 0
          %1235 = vmatpush1.bf16.msra.mxu0 0
          %1236 = vmatprep.subr.bf16.mxu0 0
          %1237 = vmatpush1.bf16.msra.mxu0 0
          %1238 = vmatprep.subr.bf16.mxu0 0
          %1239 = vmatpush1.bf16.msra.mxu0 0
          %1240 = vmatprep.subr.bf16.mxu0 0
          %1241 = vmatpush1.bf16.msra.mxu0 0
          %1242 = vmatprep.subr.bf16.mxu0 0
          %1243 = vmatpush1.bf16.msra.mxu0 0
          %1244 = vmatprep.subr.bf16.mxu0 0
          %1245 = vmatpush1.bf16.msra.mxu0 0
          %1246 = vmatprep.subr.bf16.mxu0 0
          %1247 = vmatpush1.bf16.msra.mxu0 0
          %1248 = vmatprep.subr.bf16.mxu0 0
          %1249 = vmatpush1.bf16.msra.mxu0 0
          %1250 = vmatprep.mubr.bf16.mxu0 0
          %1251 = vmatmul.mubr.bf16.gmra.mrb[0].mxu0 %v1213
          %v1252 = vpop.f32.mrb[0].mxu0
          %v1253 = vadd.f32 0.0, %v1252
          %v1254 = vpop.f32.mrb[0].mxu0
          %v1255 = vpop.f32.mrb[0].mxu0
          %v1256 = vpop.f32.mrb[0].mxu0
          %1257 = vdwg.mxu0
          %v1258 = vadd.f32 %v1094, %v1253
          %1259 = vrot.lane.b32.xlu0 %v773, 104
          %v1260 = vpop.permute.xlu0 %1259
          %1261 = vrot.lane.b32.xlu0 %v773, 72
          %v1262 = vpop.permute.xlu0 %1261
          %v1264 = vsel %vm783, %v1260, 0
          %v1267 = vsel %vm783, %v1262, 0
          %1269 = vmatprep.subr.bf16.mxu0 0
          %1270 = vmatpush1.bf16.xpose.msra.mxu0 %v1267
          %1271 = vmatprep.subr.bf16.mxu0 0
          %1272 = vmatpush1.bf16.xpose.msra.mxu0 0
          %1273 = vmatprep.subr.bf16.mxu0 0
          %1274 = vmatpush1.bf16.xpose.msra.mxu0 0
          %1275 = vmatprep.subr.bf16.mxu0 0
          %1276 = vmatpush1.bf16.xpose.msra.mxu0 0
          %1277 = vmatprep.subr.bf16.mxu0 0
          %1278 = vmatpush1.bf16.xpose.msra.mxu0 0
          %1279 = vmatprep.subr.bf16.mxu0 0
          %1280 = vmatpush1.bf16.xpose.msra.mxu0 0
          %1281 = vmatprep.subr.bf16.mxu0 0
          %1282 = vmatpush1.bf16.xpose.msra.mxu0 0
          %1283 = vmatprep.subr.bf16.mxu0 0
          %1284 = vmatpush1.bf16.xpose.msra.mxu0 0
          %1285 = vmatprep.subr.bf16.mxu0 0
          %1286 = vmatpush1.bf16.xpose.msra.mxu0 0
          %1287 = vmatprep.subr.bf16.mxu0 0
          %1288 = vmatpush1.bf16.xpose.msra.mxu0 0
          %1289 = vmatprep.subr.bf16.mxu0 0
          %1290 = vmatpush1.bf16.xpose.msra.mxu0 0
          %1291 = vmatprep.subr.bf16.mxu0 0
          %1292 = vmatpush1.bf16.xpose.msra.mxu0 0
          %1293 = vmatprep.subr.bf16.mxu0 0
          %1294 = vmatpush1.bf16.xpose.msra.mxu0 0
          %1295 = vmatprep.subr.bf16.mxu0 0
          %1296 = vmatpush1.bf16.xpose.msra.mxu0 0
          %1297 = vmatprep.subr.bf16.mxu0 0
          %1298 = vmatpush1.bf16.xpose.msra.mxu0 0
          %1299 = vmatprep.subr.bf16.mxu0 0
          %1300 = vmatpush1.bf16.xpose.msra.mxu0 0
          %1301 = vmatprep.mubr.bf16.mxu0 0
          %1302 = vmatmul.mubr.bf16.gmra.mrb[0].mxu0 %v1264
          %v1303 = vpop.f32.mrb[0].mxu0
          %v1304 = vadd.f32 0.0, %v1303
          %v1305 = vpop.f32.mrb[0].mxu0
          %v1306 = vpop.f32.mrb[0].mxu0
          %v1307 = vpop.f32.mrb[0].mxu0
          %1308 = vdwg.mxu0
          %v1309 = vmul.f32 %v1304, 0.35355338
          %v1310 = vsel %vm693, %v1309, -inf
          %v1311 = vsel %vm783, %v1310, -inf
          %1312 = vmax.xlane.f32.xlu0 %v1311
          %v1313 = vpop.xlane.xlu0 %1312
          %v1314 = vsub.f32 %v1310, %v1313
          %v1315 = vmul.f32 %v1314, 1.442695
          %v1316 = vpow.pop %v1315
          %v1317 = vsel %vm783, %v1316, 0.0
          %1318 = vadd.xlane.f32.xlu0 %v1317
          %v1319 = vpop.xlane.xlu0 %1318
          %v1320 = vrcp.pop %v1319
          %v1321 = vmul.f32 %v1316, %v1320
          %v1322 = vpack.c.bf16 %v1321, %v1321
          %1323 = vrot.lane.b32.xlu0 %v773, 40
          %v1324 = vpop.permute.xlu0 %1323
          %v1326 = vsel %vm783, %v1322, 0
          %v1329 = vsel %vm849, %v1324, 0
          %1331 = vmatprep.subr.bf16.mxu0 0
          %1332 = vmatpush1.bf16.msra.mxu0 %v1329
          %1333 = vmatprep.subr.bf16.mxu0 0
          %1334 = vmatpush1.bf16.msra.mxu0 0
          %1335 = vmatprep.subr.bf16.mxu0 0
          %1336 = vmatpush1.bf16.msra.mxu0 0
          %1337 = vmatprep.subr.bf16.mxu0 0
          %1338 = vmatpush1.bf16.msra.mxu0 0
          %1339 = vmatprep.subr.bf16.mxu0 0
          %1340 = vmatpush1.bf16.msra.mxu0 0
          %1341 = vmatprep.subr.bf16.mxu0 0
          %1342 = vmatpush1.bf16.msra.mxu0 0
          %1343 = vmatprep.subr.bf16.mxu0 0
          %1344 = vmatpush1.bf16.msra.mxu0 0
          %1345 = vmatprep.subr.bf16.mxu0 0
          %1346 = vmatpush1.bf16.msra.mxu0 0
          %1347 = vmatprep.subr.bf16.mxu0 0
          %1348 = vmatpush1.bf16.msra.mxu0 0
          %1349 = vmatprep.subr.bf16.mxu0 0
          %1350 = vmatpush1.bf16.msra.mxu0 0
          %1351 = vmatprep.subr.bf16.mxu0 0
          %1352 = vmatpush1.bf16.msra.mxu0 0
          %1353 = vmatprep.subr.bf16.mxu0 0
          %1354 = vmatpush1.bf16.msra.mxu0 0
          %1355 = vmatprep.subr.bf16.mxu0 0
          %1356 = vmatpush1.bf16.msra.mxu0 0
          %1357 = vmatprep.subr.bf16.mxu0 0
          %1358 = vmatpush1.bf16.msra.mxu0 0
          %1359 = vmatprep.subr.bf16.mxu0 0
          %1360 = vmatpush1.bf16.msra.mxu0 0
          %1361 = vmatprep.subr.bf16.mxu0 0
          %1362 = vmatpush1.bf16.msra.mxu0 0
          %1363 = vmatprep.mubr.bf16.mxu0 0
          %1364 = vmatmul.mubr.bf16.gmra.mrb[0].mxu0 %v1326
          %v1365 = vpop.f32.mrb[0].mxu0
          %v1366 = vadd.f32 0.0, %v1365
          %v1367 = vpop.f32.mrb[0].mxu0
          %v1368 = vpop.f32.mrb[0].mxu0
          %v1369 = vpop.f32.mrb[0].mxu0
          %1370 = vdwg.mxu0
          %v1371 = vpack.c.bf16 %v1366, %v1366
          %v1373 = vsel %vm783, %v1371, 0
          %v1376 = vsel %vm849, %v779, 0
          %1378 = vmatprep.subr.bf16.mxu0 0
          %1379 = vmatpush1.bf16.msra.mxu0 %v1376
          %1380 = vmatprep.subr.bf16.mxu0 0
          %1381 = vmatpush1.bf16.msra.mxu0 0
          %1382 = vmatprep.subr.bf16.mxu0 0
          %1383 = vmatpush1.bf16.msra.mxu0 0
          %1384 = vmatprep.subr.bf16.mxu0 0
          %1385 = vmatpush1.bf16.msra.mxu0 0
          %1386 = vmatprep.subr.bf16.mxu0 0
          %1387 = vmatpush1.bf16.msra.mxu0 0
          %1388 = vmatprep.subr.bf16.mxu0 0
          %1389 = vmatpush1.bf16.msra.mxu0 0
          %1390 = vmatprep.subr.bf16.mxu0 0
          %1391 = vmatpush1.bf16.msra.mxu0 0
          %1392 = vmatprep.subr.bf16.mxu0 0
          %1393 = vmatpush1.bf16.msra.mxu0 0
          %1394 = vmatprep.subr.bf16.mxu0 0
          %1395 = vmatpush1.bf16.msra.mxu0 0
          %1396 = vmatprep.subr.bf16.mxu0 0
          %1397 = vmatpush1.bf16.msra.mxu0 0
          %1398 = vmatprep.subr.bf16.mxu0 0
          %1399 = vmatpush1.bf16.msra.mxu0 0
          %1400 = vmatprep.subr.bf16.mxu0 0
          %1401 = vmatpush1.bf16.msra.mxu0 0
          %1402 = vmatprep.subr.bf16.mxu0 0
          %1403 = vmatpush1.bf16.msra.mxu0 0
          %1404 = vmatprep.subr.bf16.mxu0 0
          %1405 = vmatpush1.bf16.msra.mxu0 0
          %1406 = vmatprep.subr.bf16.mxu0 0
          %1407 = vmatpush1.bf16.msra.mxu0 0
          %1408 = vmatprep.subr.bf16.mxu0 0
          %1409 = vmatpush1.bf16.msra.mxu0 0
          %1410 = vmatprep.mubr.bf16.mxu0 0
          %1411 = vmatmul.mubr.bf16.gmra.mrb[0].mxu0 %v1373
          %v1412 = vpop.f32.mrb[0].mxu0
          %v1413 = vadd.f32 0.0, %v1412
          %v1414 = vpop.f32.mrb[0].mxu0
          %v1415 = vpop.f32.mrb[0].mxu0
          %v1416 = vpop.f32.mrb[0].mxu0
          %1417 = vdwg.mxu0
          %v1418 = vadd.f32 %v1258, %v1413
          %s1419 = scalar_lea.vmem %s7, %s695
          %v1420 = vld [vmem:[%s1419] sm:$0x1]
          %v1422 = vlaneseq
          %v1423 = vshrl.u32 %v1422, 7
          %v1424 = vsub.s32 0, %v1423
          %v1425 = vrot.slane %v1420, %v1424
          %v1427 = vadd.f32 %v1418, %v1425
          %v1428 = vadd.f32 %v700, %v1427
          %s1429 = scalar_lea.vmem %s8, %s695
          %v1430 = vld [vmem:[%s1429] sm:$0x1]
          %s1431 = scalar_lea.vmem [#allocation2], %s695
          %v1432 = vld [vmem:[%s1431] sm:$0x1]
          %v1433 = vsel %vm729, %v1428, 0.0
          %1434 = vadd.xlane.f32.xlu0 %v1433
          %v1435 = vpop.xlane.xlu0 %1434
          %v1436 = vrcp.pop 32.0
          %v1437 = vmul.f32 %v1435, %v1436
          %v1438 = vsub.f32 %v1428, %v1437
          %v1439 = vmul.f32 %v1438, %v1438
          %v1440 = vsel %vm729, %v1439, 0.0
          %1441 = vadd.xlane.f32.xlu0 %v1440
          %v1442 = vpop.xlane.xlu0 %1441
          %v1443 = vmul.f32 %v1442, %v1436
          %v1444 = vadd.f32 %v1443, 1e-05
          %v1445 = vrsqrt.pop %v1444
          %v1446 = vmul.f32 %v1438, %v1445
          %v1448 = vlaneseq
          %v1449 = vshrl.u32 %v1448, 7
          %v1450 = vsub.s32 0, %v1449
          %v1451 = vrot.slane %v1430, %v1450
          %v1453 = vmul.f32 %v1446, %v1451
          %v1455 = vlaneseq
          %v1456 = vshrl.u32 %v1455, 7
          %v1457 = vsub.s32 0, %v1456
          %v1458 = vrot.slane %v1432, %v1457
          %v1460 = vadd.f32 %v1453, %v1458
          %v1461 = vpack.c.bf16 %v1460, %v1460
          %s1462 = smul.addr %s702, 4
          %s1463 = scalar_lea.vmem %s10, %s1462
          %v1464 = vld [vmem:[%s1463] sm:$0xf]
          %v1465 = vld [vmem:[%s1463 + $0x4] sm:$0xf]
          %v1466 = vld [vmem:[%s1463 + $0x8] sm:$0xf]
          %v1467 = vld [vmem:[%s1463 + $0xc] sm:$0xf]
          %s1468 = scalar_lea.vmem [#allocation5], %s695
          %v1469 = vld [vmem:[%s1468] sm:$0x1]
          %v1471 = vlaneseq
          %v1472 = vshrl.u32 %v1471, 7
          %v1473 = vsub.s32 0, %v1472
          %v1474 = vrot.slane %v1469, %v1473
          %v1480 = vunpack.c.l.b16 %v1464
          %v1481 = vunpack.c.l.b16 %v1465
          %v1482 = vunpack.c.l.b16 %v1466
          %v1483 = vunpack.c.l.b16 %v1467
          %v1484 = vpack.c.b16 %v1481, %v1480
          %v1485 = vpack.c.b16 %v1483, %v1482
          %v1489 = vsel %vm729, %v1461, 0
          %1491 = vmatprep.subr.bf16.mxu0 0
          %1492 = vmatpush1.bf16.msra.mxu0 %v1484
          %1493 = vmatprep.subr.bf16.mxu0 0
          %1494 = vmatpush1.bf16.msra.mxu0 %v1485
          %1495 = vmatprep.subr.bf16.mxu0 0
          %1496 = vmatpush1.bf16.msra.mxu0 0
          %1497 = vmatprep.subr.bf16.mxu0 0
          %1498 = vmatpush1.bf16.msra.mxu0 0
          %1499 = vmatprep.subr.bf16.mxu0 0
          %1500 = vmatpush1.bf16.msra.mxu0 0
          %1501 = vmatprep.subr.bf16.mxu0 0
          %1502 = vmatpush1.bf16.msra.mxu0 0
          %1503 = vmatprep.subr.bf16.mxu0 0
          %1504 = vmatpush1.bf16.msra.mxu0 0
          %1505 = vmatprep.subr.bf16.mxu0 0
          %1506 = vmatpush1.bf16.msra.mxu0 0
          %1507 = vmatprep.subr.bf16.mxu0 0
          %1508 = vmatpush1.bf16.msra.mxu0 0
          %1509 = vmatprep.subr.bf16.mxu0 0
          %1510 = vmatpush1.bf16.msra.mxu0 0
          %1511 = vmatprep.subr.bf16.mxu0 0
          %1512 = vmatpush1.bf16.msra.mxu0 0
          %1513 = vmatprep.subr.bf16.mxu0 0
          %1514 = vmatpush1.bf16.msra.mxu0 0
          %1515 = vmatprep.subr.bf16.mxu0 0
          %1516 = vmatpush1.bf16.msra.mxu0 0
          %1517 = vmatprep.subr.bf16.mxu0 0
          %1518 = vmatpush1.bf16.msra.mxu0 0
          %1519 = vmatprep.subr.bf16.mxu0 0
          %1520 = vmatpush1.bf16.msra.mxu0 0
          %1521 = vmatprep.subr.bf16.mxu0 0
          %1522 = vmatpush1.bf16.msra.mxu0 0
          %1523 = vmatprep.mubr.bf16.mxu0 0
          %1524 = vmatmul.mubr.bf16.gmra.mrb[0].mxu0 %v1489
          %v1525 = vpop.f32.mrb[0].mxu0
          %v1526 = vadd.f32 %v1474, %v1525
          %v1527 = vpop.f32.mrb[0].mxu0
          %v1528 = vpop.f32.mrb[0].mxu0
          %v1529 = vpop.f32.mrb[0].mxu0
          %1530 = vdwg.mxu0
          %v1531 = vmul.f32 %v1526, 0.5
          %v1532 = vmul.f32 %v1526, 0.70710677
          %vm1533 = vcmp.ge.f32.partialorder %v1532, 0.0
          %v1534 = vsel %vm1533, 1.0, -1.0
          %v1535 = vand.u32 2147483647, %v1532
          %v1536 = vmul.f32 %v1535, 0.3275911
          %v1537 = vadd.f32 %v1536, 1.0
          %v1538 = vrcp.pop %v1537
          %v1539 = vmul.f32 1.0, %v1538
          %v1540 = vmul.f32 %v1539, 1.0614054
          %v1541 = vadd.f32 %v1540, -1.4531521
          %v1542 = vmul.f32 %v1541, %v1539
          %v1543 = vadd.f32 %v1542, 1.4214138
          %v1544 = vmul.f32 %v1543, %v1539
          %v1545 = vadd.f32 %v1544, -0.28449672
          %v1546 = vmul.f32 %v1545, %v1539
          %v1547 = vadd.f32 %v1546, 0.2548296
          %v1548 = vmul.f32 %v1547, %v1539
          %v1549 = vsub.f32 0.0, %v1535
          %v1550 = vmul.f32 %v1549, %v1535
          %v1551 = vmul.f32 %v1550, 1.442695
          %v1552 = vpow.pop %v1551
          %v1553 = vmul.f32 %v1548, %v1552
          %v1554 = vsub.f32 1.0, %v1553
          %v1555 = vmul.f32 %v1534, %v1554
          %v1556 = vadd.f32 %v1555, 1.0
          %v1557 = vmul.f32 %v1531, %v1556
          %v1558 = vpack.c.bf16 %v1557, %v1557
          %s1559 = smul.u32 %s695, 8
          %s1560 = smul.addr %s1559, 4
          %s1561 = scalar_lea.vmem %s12, %s1560
          %v1562 = vld [vmem:[%s1561] sm:$0xf]
          %v1563 = vld [vmem:[%s1561 + $0x4] sm:$0xf]
          %v1564 = vld [vmem:[%s1561 + $0x8] sm:$0xf]
          %v1565 = vld [vmem:[%s1561 + $0xc] sm:$0xf]
          %v1566 = vld [vmem:[%s1561 + $0x10] sm:$0xf]
          %v1567 = vld [vmem:[%s1561 + $0x14] sm:$0xf]
          %v1568 = vld [vmem:[%s1561 + $0x18] sm:$0xf]
          %v1569 = vld [vmem:[%s1561 + $0x1c] sm:$0xf]
          %s1570 = scalar_lea.vmem %s13, %s695
          %v1571 = vld [vmem:[%s1570] sm:$0x1]
          %v1573 = vlaneseq
          %v1574 = vshrl.u32 %v1573, 7
          %v1575 = vsub.s32 0, %v1574
          %v1576 = vrot.slane %v1571, %v1575
          %v1586 = vunpack.c.l.b16 %v1562
          %v1587 = vunpack.c.l.b16 %v1563
          %v1588 = vunpack.c.l.b16 %v1564
          %v1589 = vunpack.c.l.b16 %v1565
          %v1590 = vunpack.c.l.b16 %v1566
          %v1591 = vunpack.c.l.b16 %v1567
          %v1592 = vunpack.c.l.b16 %v1568
          %v1593 = vunpack.c.l.b16 %v1569
          %v1594 = vpack.c.b16 %v1587, %v1586
          %v1595 = vpack.c.b16 %v1589, %v1588
          %v1596 = vpack.c.b16 %v1591, %v1590
          %v1597 = vpack.c.b16 %v1593, %v1592
          %vm1602 = vcmask 523264
          %v1604 = vsel %vm1602, %v1558, 0
          %1606 = vmatprep.subr.bf16.mxu0 0
          %1607 = vmatpush1.bf16.msra.mxu0 %v1594
          %1608 = vmatprep.subr.bf16.mxu0 0
          %1609 = vmatpush1.bf16.msra.mxu0 %v1595
          %1610 = vmatprep.subr.bf16.mxu0 0
          %1611 = vmatpush1.bf16.msra.mxu0 %v1596
          %1612 = vmatprep.subr.bf16.mxu0 0
          %1613 = vmatpush1.bf16.msra.mxu0 %v1597
          %1614 = vmatprep.subr.bf16.mxu0 0
          %1615 = vmatpush1.bf16.msra.mxu0 0
          %1616 = vmatprep.subr.bf16.mxu0 0
          %1617 = vmatpush1.bf16.msra.mxu0 0
          %1618 = vmatprep.subr.bf16.mxu0 0
          %1619 = vmatpush1.bf16.msra.mxu0 0
          %1620 = vmatprep.subr.bf16.mxu0 0
          %1621 = vmatpush1.bf16.msra.mxu0 0
          %1622 = vmatprep.subr.bf16.mxu0 0
          %1623 = vmatpush1.bf16.msra.mxu0 0
          %1624 = vmatprep.subr.bf16.mxu0 0
          %1625 = vmatpush1.bf16.msra.mxu0 0
          %1626 = vmatprep.subr.bf16.mxu0 0
          %1627 = vmatpush1.bf16.msra.mxu0 0
          %1628 = vmatprep.subr.bf16.mxu0 0
          %1629 = vmatpush1.bf16.msra.mxu0 0
          %1630 = vmatprep.subr.bf16.mxu0 0
          %1631 = vmatpush1.bf16.msra.mxu0 0
          %1632 = vmatprep.subr.bf16.mxu0 0
          %1633 = vmatpush1.bf16.msra.mxu0 0
          %1634 = vmatprep.subr.bf16.mxu0 0
          %1635 = vmatpush1.bf16.msra.mxu0 0
          %1636 = vmatprep.subr.bf16.mxu0 0
          %1637 = vmatpush1.bf16.msra.mxu0 0
          %1638 = vmatprep.mubr.bf16.mxu0 0
          %1639 = vmatmul.mubr.bf16.gmra.mrb[0].mxu0 %v1604
          %v1640 = vpop.f32.mrb[0].mxu0
          %v1641 = vadd.f32 %v1576, %v1640
          %v1642 = vpop.f32.mrb[0].mxu0
          %v1643 = vpop.f32.mrb[0].mxu0
          %v1644 = vpop.f32.mrb[0].mxu0
          %1645 = vdwg.mxu0
          %v1646 = vadd.f32 %v1460, %v1641
          %s1647 = scalar_lea.vmem %s14, %s695
          %v1648 = vld [vmem:[%s1647] sm:$0x1]
          %s1649 = scalar_lea.vmem %s15, %s695
          %v1650 = vld [vmem:[%s1649] sm:$0x1]
          %v1651 = vsel %vm729, %v1646, 0.0
          %1652 = vadd.xlane.f32.xlu0 %v1651
          %v1653 = vpop.xlane.xlu0 %1652
          %v1654 = vmul.f32 %v1653, %v1436
          %v1655 = vsub.f32 %v1646, %v1654
          %v1656 = vmul.f32 %v1655, %v1655
          %v1657 = vsel %vm729, %v1656, 0.0
          %1658 = vadd.xlane.f32.xlu0 %v1657
          %v1659 = vpop.xlane.xlu0 %1658
          %v1660 = vmul.f32 %v1659, %v1436
          %v1661 = vadd.f32 %v1660, 1e-05
          %v1662 = vrsqrt.pop %v1661
          %v1663 = vmul.f32 %v1655, %v1662
          %v1665 = vlaneseq
          %v1666 = vshrl.u32 %v1665, 7
          %v1667 = vsub.s32 0, %v1666
          %v1668 = vrot.slane %v1648, %v1667
          %v1670 = vmul.f32 %v1663, %v1668
          %v1672 = vlaneseq
          %v1673 = vshrl.u32 %v1672, 7
          %v1674 = vsub.s32 0, %v1673
          %v1675 = vrot.slane %v1650, %v1674
          %v1677 = vadd.f32 %v1670, %v1675
        $region105: #{tpu_custom_call.1} parent=91 // loop_footer
          %s699 = sadd.s32 1, %s695
        $region106: #{tpu_custom_call.1} parent=91 // loop_footer_branch
          %694 = sbr.rel target = $region102
        $region107: #{tpu_custom_call.1} parent=91 // loop_exit
          _
        %v1678 = vpack.c.bf16 %v700, %v700
        %v1679 = vld [vmem:[%s16] sm:$0xf]
        %v1680 = vld [vmem:[%s16 + $0x4] sm:$0xf]
        %v1681 = vld [vmem:[%s16 + $0x8] sm:$0xf]
        %v1682 = vld [vmem:[%s16 + $0xc] sm:$0xf]
        %v1683 = vld [vmem:[%s17] sm:$0x1]
        %v1685 = vlaneseq
        %v1686 = vshrl.u32 %v1685, 7
        %v1687 = vsub.s32 0, %v1686
        %v1688 = vrot.slane %v1683, %v1687
        %v1694 = vunpack.c.l.b16 %v1679
        %v1695 = vunpack.c.l.b16 %v1680
        %v1696 = vunpack.c.l.b16 %v1681
        %v1697 = vunpack.c.l.b16 %v1682
        %v1698 = vpack.c.b16 %v1695, %v1694
        %v1699 = vpack.c.b16 %v1697, %v1696
        %vm1702 = vcmask 261120
        %v1704 = vsel %vm1702, %v1678, 0
        %1706 = vmatprep.subr.bf16.mxu0 0
        %1707 = vmatpush1.bf16.msra.mxu0 %v1698
        %1708 = vmatprep.subr.bf16.mxu0 0
        %1709 = vmatpush1.bf16.msra.mxu0 %v1699
        %1710 = vmatprep.subr.bf16.mxu0 0
        %1711 = vmatpush1.bf16.msra.mxu0 0
        %1712 = vmatprep.subr.bf16.mxu0 0
        %1713 = vmatpush1.bf16.msra.mxu0 0
        %1714 = vmatprep.subr.bf16.mxu0 0
        %1715 = vmatpush1.bf16.msra.mxu0 0
        %1716 = vmatprep.subr.bf16.mxu0 0
        %1717 = vmatpush1.bf16.msra.mxu0 0
        %1718 = vmatprep.subr.bf16.mxu0 0
        %1719 = vmatpush1.bf16.msra.mxu0 0
        %1720 = vmatprep.subr.bf16.mxu0 0
        %1721 = vmatpush1.bf16.msra.mxu0 0
        %1722 = vmatprep.subr.bf16.mxu0 0
        %1723 = vmatpush1.bf16.msra.mxu0 0
        %1724 = vmatprep.subr.bf16.mxu0 0
        %1725 = vmatpush1.bf16.msra.mxu0 0
        %1726 = vmatprep.subr.bf16.mxu0 0
        %1727 = vmatpush1.bf16.msra.mxu0 0
        %1728 = vmatprep.subr.bf16.mxu0 0
        %1729 = vmatpush1.bf16.msra.mxu0 0
        %1730 = vmatprep.subr.bf16.mxu0 0
        %1731 = vmatpush1.bf16.msra.mxu0 0
        %1732 = vmatprep.subr.bf16.mxu0 0
        %1733 = vmatpush1.bf16.msra.mxu0 0
        %1734 = vmatprep.subr.bf16.mxu0 0
        %1735 = vmatpush1.bf16.msra.mxu0 0
        %1736 = vmatprep.subr.bf16.mxu0 0
        %1737 = vmatpush1.bf16.msra.mxu0 0
        %1738 = vmatprep.mubr.bf16.mxu0 0
        %1739 = vmatmul.mubr.bf16.gmra.mrb[0].mxu0 %v1704
        %v1740 = vpop.f32.mrb[0].mxu0
        %v1741 = vadd.f32 %v1688, %v1740
        %v1742 = vpop.f32.mrb[0].mxu0
        %v1743 = vpop.f32.mrb[0].mxu0
        %v1744 = vpop.f32.mrb[0].mxu0
        %1745 = vdwg.mxu0
        %1746 = vst [vmem:[%s596] sm:$0xff] %v1741
        %s1747 = sand.u32 %s425, 1
        %s1748 = scalar_lea.sflag [#allocation4], %s1747
        %s1749 = sand.u32 %s425, 1
        %s1750 = smul.addr %s1749, 8
        %s1751 = scalar_lea.vmem [#allocation7], %s1750
        // Predicated region
        $region108: #{tpu_custom_call.1} parent=91 // pred_check
          %p1752 = pneg %p435
        $region109: #{tpu_custom_call.1} parent=91 // pred_check_branch
          %1754 = sbr.rel (%p1752) target = $region111
        $region110: #{tpu_custom_call.1} parent=91 // pred_region
          %s1756 = ssub.s32 128, 128
          %1757 = vsyncadd %s1748, %s1756
          %s1758 = smul.addr %s34, 128
          %s1759 = scalar_lea.hbm %s18, %s1758
          %s1761 = sshll.u32 %s1751, 4
          %s1762 = int_to_ptr.vmem [resolvable:$true] %s1761
          %1764 = dma.vmem_to_hbm [thread:$0]  %s1762, 128, %s1759, %s1748
        $region111: #{tpu_custom_call.1} parent=91 // pred_fallthru
          _
      $region92: #{tpu_custom_call.1} parent=5 // pred_fallthru
        _
      %p1765 = scmp.le.s32.totalorder 2, %s29
      // Predicated region
      $region112: #{tpu_custom_call.1} parent=5 // pred_check
        %p1766 = pneg %p1765
      $region113: #{tpu_custom_call.1} parent=5 // pred_check_branch
        %1768 = sbr.rel (%p1766) target = $region115
      $region114: #{tpu_custom_call.1} parent=5 // pred_region
        %s1769 = ssub.s32 %s29, 2
        // Predicated region
        $region116: #{tpu_custom_call.1} parent=114 // pred_check
          %p1770 = pneg %p441
        $region117: #{tpu_custom_call.1} parent=114 // pred_check_branch
          %1772 = sbr.rel (%p1770) target = $region119
        $region118: #{tpu_custom_call.1} parent=114 // pred_region
          %s1773 = sand.u32 %s426, 1
          %s1774 = scalar_lea.sflag [#allocation4], %s1773
          %s1775 = sand.u32 %s426, 1
          %s1776 = smul.addr %s1775, 8
          %s1777 = scalar_lea.vmem [#allocation7], %s1776
          %1778 = dma.done %s1774, 128
        $region119: #{tpu_custom_call.1} parent=114 // pred_fallthru
          _
      $region115: #{tpu_custom_call.1} parent=5 // pred_fallthru
        _
    $region6: #{tpu_custom_call.1} parent=1 // loop_footer
      %s33 = sadd.s32 1, %s29
    $region7: #{tpu_custom_call.1} parent=1 // loop_footer_branch
      %28 = sbr.rel target = $region3
    $region8: #{tpu_custom_call.1} parent=1 // loop_exit
      _
    %1779 = vsyncpa [#allocation3], 1
    %s1780 = scalar_lea.sflag [#allocation3], 1
    %1781 = vsyncpa %s1780, 1
    %1782 = vsyncpa [#allocation6], 1
    %1783 = vsyncpa [#allocation4], 1
    %s1784 = scalar_lea.sflag [#allocation4], 1
    %1785 = vsyncpa %s1784, 1

</llo_original>
